<compile_context>
chip_gen: v5e
topology: v5e:2x2
jax: 0.10.0
libtpu: 0.0.40
codegen_flags: <defaults>
</compile_context>

<pallas_src>
import functools

import jax
import jax.numpy as jnp
from jax.experimental import pallas as pl
from jax.experimental.pallas import tpu as pltpu

_POOL_LANES = 128                       # lane padding for the pooled (C, tb) matrix
_VMEM_LIMIT_BYTES = 48 * 1024 * 1024    # above the default scoped limit (16 MiB on
                                        # v5e, 32 MiB on v6e/v7x), with headroom
                                        # under v7x's 64 MiB physical VMEM.
_SQRT_2_OVER_PI = 0.7978845608028654


def _gelu_tanh(x):
    # torch.nn.GELU(approximate='tanh') form: ~8 VALU ops + 1 EUP tanh/element,
    # ~3x fewer VALU ops than the erf path the kernel was previously bound on.
    return 0.5 * x * (1.0 + jnp.tanh(_SQRT_2_OVER_PI * x * (1.0 + 0.044715 * x * x)))


def _conv_adapter_kernel(x_ref, w1_ref, b1_ref, w2t_ref, b2_ref, o_ref, *, tb):
    """One grid step processes `tb` batch elements straight from NCHW layout.

    x_ref  : (tb, C, HW) activation block -- C on sublanes, HW on lanes, so the
             first 1x1 conv is a plain (C, C) @ (C, HW) MXU matmul and no
             transpose of the activations is needed anywhere (HBM or VMEM).
    w1_ref : (C, C) first conv weight (native dtype -> fast MXU path).
    b1_ref : (C, 1) f32 first conv bias (column; broadcasts over lanes).
    w2t_ref: (C, C) second conv weight, pre-transposed to (C_in, C_out).
    b2_ref : (1, C) f32 second conv bias (row; broadcasts over sublanes).
    o_ref  : (1, tb, C) output block -- last dim C => lane-dense stores.
    """
    C = w1_ref.shape[0]
    inv_hw = 1.0 / x_ref.shape[2]
    # Lane index of each pooled column (hoisted out of the loop; 1 vreg).
    lane_ids = jax.lax.broadcasted_iota(jnp.int32, (1, _POOL_LANES), 1)

    def body(t, pooled):
        # Conv2d(dim, dim, 1) == per-pixel channel matmul on the MXU, f32 acc.
        y1 = jnp.dot(w1_ref[...], x_ref[t],
                     preferred_element_type=jnp.float32) + b1_ref[...]
        g1 = _gelu_tanh(y1)                                     # (C, HW) f32
        # AdaptiveAvgPool2d((1, 1)) == mean over the spatial (lane) axis (XLU).
        col = jnp.sum(g1, axis=1, keepdims=True) * inv_hw       # (C, 1)
        # Deposit column t of the pooled matrix with a lane select; `pooled`
        # stays in registers for the whole loop (no masked VMEM stores).
        return jnp.where(lane_ids == t, col, pooled)

    pooled = jax.lax.fori_loop(
        0, tb, body, jnp.zeros((C, _POOL_LANES), jnp.float32), unroll=True)

    # Second 1x1 conv for all tb pooled vectors at once, contracted so the
    # result lands directly in (batch-on-sublanes, channel-on-lanes) layout:
    #   y2[t, o] = sum_c pooled[c, t] * w2t[c, o]     (w2t = w2.T, native dtype)
    # The .astype is an exact no-op for f32 params and selects the single-pass
    # MXU path when the params are bf16.
    y2 = jax.lax.dot_general(
        pooled.astype(w2t_ref.dtype), w2t_ref[...],
        dimension_numbers=(((0,), (0,)), ((), ())),
        preferred_element_type=jnp.float32)                     # (_POOL_LANES, C)
    o_ref[0] = _gelu_tanh(y2[:tb, :] + b2_ref[...]).astype(o_ref.dtype)


def _choose_block_batch(B, C, HW, itemsize, *, budget_bytes=8 << 20, tb_cap=8):
    """Batch elements per grid step.

    * keeps the double-buffered (tb, C, HW) activation block within
      `budget_bytes` (8 MiB -> 16 MiB double-buffered; we also raise
      vmem_limit_bytes to 48 MiB, since the default scoped limit is only
      16 MiB on v5e and 32 MiB on v6e/v7x);
    * prefers >= 4 grid steps (>= 2 steps per TensorCore on v7x, and enough
      steps on single-TC v5e/v6e for the auto double-buffer to hide the HBM
      reads), falling back to >= 2, then any;
    * caps tb (default 8) to bound the in-kernel loop and keep the (tb, C)
      output block within one sublane tile.
    """
    per_batch = max(1, C * HW * itemsize)
    max_tb = max(1, min(tb_cap, budget_bytes // per_batch))
    divisors = [d for d in range(1, B + 1) if B % d == 0 and d <= max_tb] or [1]
    for min_steps in (4, 2, 1):
        cands = [d for d in divisors if B // d >= min_steps]
        if cands:
            return max(cands)
    return 1


def conv_adapter_forward(x_nchw, w1, b1, w2, b2, *, block_batch=None):
    """ConvAdapter forward.  x_nchw: (B, C, H, W); w*: (C, C, 1, 1); b*: (C,)."""
    B, C, H, W = x_nchw.shape
    HW = H * W

    # Layout-preserving reshapes only -- no HBM transpose pass over x.
    x3 = x_nchw.reshape(B, C, HW)
    w1_2d = w1.reshape(C, C)
    w2t_2d = w2.reshape(C, C).T           # tiny one-off (C, C); lets the kernel
                                          # contract both dim-0s and emit (tb, C)
    b1_col = b1.reshape(C, 1).astype(jnp.float32)
    b2_row = b2.reshape(1, C).astype(jnp.float32)

    tb = block_batch if block_batch is not None else _choose_block_batch(
        B, C, HW, x_nchw.dtype.itemsize)
    assert B % tb == 0 and tb <= _POOL_LANES, (B, tb)
    grid = (B // tb,)

    kernel = functools.partial(_conv_adapter_kernel, tb=tb)

    # NOTE: the four weight/bias inputs have constant index_maps, so the Pallas
    # pipeline DMAs them only once; their double buffers are tiny at these sizes
    # (pl.Buffered(1) would reclaim ~3*C^2*itemsize only for very large C).
    out = pl.pallas_call(
        kernel,
        out_shape=jax.ShapeDtypeStruct((B // tb, tb, C), x_nchw.dtype),
        grid_spec=pltpu.PrefetchScalarGridSpec(
            num_scalar_prefetch=0,
            grid=grid,
            in_specs=[
                pl.BlockSpec((tb, C, HW), lambda g: (g, 0, 0)),  # activations
                pl.BlockSpec((C, C), lambda g: (0, 0)),          # w1
                pl.BlockSpec((C, 1), lambda g: (0, 0)),          # b1
                pl.BlockSpec((C, C), lambda g: (0, 0)),          # w2^T
                pl.BlockSpec((1, C), lambda g: (0, 0)),          # b2
            ],
            out_specs=pl.BlockSpec((1, tb, C), lambda g: (g, 0, 0)),
        ),
        compiler_params=pltpu.CompilerParams(
            dimension_semantics=("parallel",),
            vmem_limit_bytes=_VMEM_LIMIT_BYTES),
    )(x3, w1_2d, b1_col, w2t_2d, b2_row)

    # (B//tb, tb, C) -> (B, 1, C) is a pure contiguous reshape -- the previous
    # wrapper-side transpose of the kernel output is gone.
    return out.reshape(B, 1, C)


def conv_adapter_reference(x_nchw, w1, b1, w2, b2):
    """Pure-JAX reference mirroring the PyTorch forward (f32, exact erf-GELU)."""
    B, C, H, W = x_nchw.shape
    x = x_nchw.reshape(B, C, H * W)
    y1 = jnp.einsum("oc,bch->boh", w1.reshape(C, C), x,
                    precision=jax.lax.Precision.HIGHEST) + b1[None, :, None]
    g1 = jax.nn.gelu(y1, approximate=False)
    pooled = jnp.mean(g1, axis=2)                                    # (B, C)
    y2 = jnp.einsum("oc,bc->bo", w2.reshape(C, C), pooled,
                    precision=jax.lax.Precision.HIGHEST) + b2[None, :]
    g2 = jax.nn.gelu(y2, approximate=False)
    return g2[:, None, :]                                            # (B, 1, C)


if __name__ == "__main__":
    key = jax.random.PRNGKey(0)
    B, dim, H, W = 8, 128, 16, 16   # dim plays the role of ConvAdapter(dim=...)
    k_x, k_w1, k_b1, k_w2, k_b2 = jax.random.split(key, 5)

    x = jax.random.normal(k_x, (B, dim, H, W), dtype=jnp.float32)
    # PyTorch Conv2d(dim, dim, kernel_size=1): weight (out, in, 1, 1), bias (out,)
    w1 = jax.random.normal(k_w1, (dim, dim, 1, 1), dtype=jnp.float32) * 0.05
    b1 = jax.random.normal(k_b1, (dim,), dtype=jnp.float32) * 0.05
    w2 = jax.random.normal(k_w2, (dim, dim, 1, 1), dtype=jnp.float32) * 0.05
    b2 = jax.random.normal(k_b2, (dim,), dtype=jnp.float32) * 0.05

    out = conv_adapter_forward(x, w1, b1, w2, b2)
    out = jax.block_until_ready(out)

    ref = conv_adapter_reference(x, w1, b1, w2, b2)
    assert out.shape == (B, 1, dim), out.shape
    max_err = float(jnp.max(jnp.abs(out - ref)))
    assert bool(jnp.allclose(out, ref, atol=1e-3, rtol=1e-3)), max_err
    print("KERNEL_OK")
</pallas_src>

<mosaic_0001>
module attributes {stable_mosaic.version = 11 : i64} {
  func.func @_conv_adapter_kernel(%arg0: i32, %arg1: memref<2x128x256xf32, #tpu.memory_space<vmem>>, %arg2: memref<128x128xf32, #tpu.memory_space<vmem>>, %arg3: memref<128x1xf32, #tpu.memory_space<vmem>>, %arg4: memref<128x128xf32, #tpu.memory_space<vmem>>, %arg5: memref<1x128xf32, #tpu.memory_space<vmem>>, %arg6: memref<1x2x128xf32, #tpu.memory_space<vmem>>) attributes {dimension_semantics = [#tpu.dimension_semantics<parallel>], iteration_bounds = array<i64: 4>, scalar_prefetch = 0 : i64, scratch_operands = 0 : i64, tpu.core_type = #tpu.core_type<tc>, window_params = [{transform_indices = @transform_0, window_bounds = array<i64: 2, 128, 256>}, {pipeline_mode = #tpu.pipeline_mode<synchronous>, transform_indices = @transform_1, window_bounds = array<i64: 128, 128>}, {pipeline_mode = #tpu.pipeline_mode<synchronous>, transform_indices = @transform_2, window_bounds = array<i64: 128, 1>}, {pipeline_mode = #tpu.pipeline_mode<synchronous>, transform_indices = @transform_3, window_bounds = array<i64: 128, 128>}, {pipeline_mode = #tpu.pipeline_mode<synchronous>, transform_indices = @transform_4, window_bounds = array<i64: 1, 128>}, {transform_indices = @transform_5, window_bounds = array<i64: 1, 2, 128>}]} {
    %0 = tpu.iota {dimensions = array<i32: 1>} : vector<1x128xi32>
    %cst = arith.constant 0.000000e+00 : f32
    %1 = vector.broadcast %cst : f32 to vector<128x128xf32>
    %c0_i32 = arith.constant 0 : i32
    %c0 = arith.constant 0 : index
    %c0_0 = arith.constant 0 : index
    %2 = vector.load %arg2[%c0, %c0_0] : memref<128x128xf32, #tpu.memory_space<vmem>>, vector<128x128xf32>
    %3 = arith.index_cast %c0_i32 : i32 to index
    %c0_1 = arith.constant 0 : index
    %c0_2 = arith.constant 0 : index
    %4 = vector.load %arg1[%3, %c0_1, %c0_2] : memref<2x128x256xf32, #tpu.memory_space<vmem>>, vector<1x128x256xf32>
    %5 = vector.shape_cast %4 : vector<1x128x256xf32> to vector<128x256xf32>
    %cst_3 = arith.constant dense<0.000000e+00> : vector<128x256xf32>
    %6 = tpu.matmul %2, %5, %cst_3 {dimension_numbers = #tpu.dot_dimension_numbers<[1], [0], [0], [1], [0, 0, 1, 1], [], []>} : vector<128x128xf32>, vector<128x256xf32>, vector<128x256xf32> -> vector<128x256xf32>
    %c0_4 = arith.constant 0 : index
    %c0_5 = arith.constant 0 : index
    %7 = vector.load %arg3[%c0_4, %c0_5] : memref<128x1xf32, #tpu.memory_space<vmem>>, vector<128x1xf32>
    %8 = vector.broadcast %7 : vector<128x1xf32> to vector<128x256xf32>
    %9 = arith.addf %6, %8 : vector<128x256xf32>
    %cst_6 = arith.constant 5.000000e-01 : f32
    %10 = vector.broadcast %cst_6 : f32 to vector<128x256xf32>
    %11 = arith.mulf %10, %9 : vector<128x256xf32>
    %cst_7 = arith.constant 0.797884583 : f32
    %12 = vector.broadcast %cst_7 : f32 to vector<128x256xf32>
    %13 = arith.mulf %12, %9 : vector<128x256xf32>
    %cst_8 = arith.constant 4.471500e-02 : f32
    %14 = vector.broadcast %cst_8 : f32 to vector<128x256xf32>
    %15 = arith.mulf %14, %9 : vector<128x256xf32>
    %16 = arith.mulf %15, %9 : vector<128x256xf32>
    %cst_9 = arith.constant 1.000000e+00 : f32
    %17 = vector.broadcast %cst_9 : f32 to vector<128x256xf32>
    %18 = arith.addf %17, %16 : vector<128x256xf32>
    %19 = arith.mulf %13, %18 : vector<128x256xf32>
    %20 = math.tanh %19 : vector<128x256xf32>
    %cst_10 = arith.constant 1.000000e+00 : f32
    %21 = vector.broadcast %cst_10 : f32 to vector<128x256xf32>
    %22 = arith.addf %21, %20 : vector<128x256xf32>
    %23 = arith.mulf %11, %22 : vector<128x256xf32>
    %cst_11 = arith.constant dense<0.000000e+00> : vector<128xf32>
    %24 = vector.multi_reduction <add>, %23, %cst_11 [1] : vector<128x256xf32> to vector<128xf32>
    %25 = vector.shape_cast %24 : vector<128xf32> to vector<128x1xf32>
    %cst_12 = arith.constant 3.906250e-03 : f32
    %26 = vector.broadcast %cst_12 : f32 to vector<128x1xf32>
    %27 = arith.mulf %25, %26 : vector<128x1xf32>
    %28 = vector.broadcast %c0_i32 : i32 to vector<1x128xi32>
    %29 = arith.cmpi eq, %0, %28 : vector<1x128xi32>
    %30 = vector.shape_cast %29 : vector<1x128xi1> to vector<1x128xi1>
    %31 = vector.broadcast %30 : vector<1x128xi1> to vector<128x128xi1>
    %32 = vector.shape_cast %27 : vector<128x1xf32> to vector<128x1xf32>
    %33 = vector.broadcast %32 : vector<128x1xf32> to vector<128x128xf32>
    %34 = arith.select %31, %33, %1 : vector<128x128xi1>, vector<128x128xf32>
    %c1_i32 = arith.constant 1 : i32
    %c0_13 = arith.constant 0 : index
    %c0_14 = arith.constant 0 : index
    %35 = vector.load %arg2[%c0_13, %c0_14] : memref<128x128xf32, #tpu.memory_space<vmem>>, vector<128x128xf32>
    %36 = arith.index_cast %c1_i32 : i32 to index
    %c0_15 = arith.constant 0 : index
    %c0_16 = arith.constant 0 : index
    %37 = vector.load %arg1[%36, %c0_15, %c0_16] : memref<2x128x256xf32, #tpu.memory_space<vmem>>, vector<1x128x256xf32>
    %38 = vector.shape_cast %37 : vector<1x128x256xf32> to vector<128x256xf32>
    %cst_17 = arith.constant dense<0.000000e+00> : vector<128x256xf32>
    %39 = tpu.matmul %35, %38, %cst_17 {dimension_numbers = #tpu.dot_dimension_numbers<[1], [0], [0], [1], [0, 0, 1, 1], [], []>} : vector<128x128xf32>, vector<128x256xf32>, vector<128x256xf32> -> vector<128x256xf32>
    %c0_18 = arith.constant 0 : index
    %c0_19 = arith.constant 0 : index
    %40 = vector.load %arg3[%c0_18, %c0_19] : memref<128x1xf32, #tpu.memory_space<vmem>>, vector<128x1xf32>
    %41 = vector.broadcast %40 : vector<128x1xf32> to vector<128x256xf32>
    %42 = arith.addf %39, %41 : vector<128x256xf32>
    %cst_20 = arith.constant 5.000000e-01 : f32
    %43 = vector.broadcast %cst_20 : f32 to vector<128x256xf32>
    %44 = arith.mulf %43, %42 : vector<128x256xf32>
    %cst_21 = arith.constant 0.797884583 : f32
    %45 = vector.broadcast %cst_21 : f32 to vector<128x256xf32>
    %46 = arith.mulf %45, %42 : vector<128x256xf32>
    %cst_22 = arith.constant 4.471500e-02 : f32
    %47 = vector.broadcast %cst_22 : f32 to vector<128x256xf32>
    %48 = arith.mulf %47, %42 : vector<128x256xf32>
    %49 = arith.mulf %48, %42 : vector<128x256xf32>
    %cst_23 = arith.constant 1.000000e+00 : f32
    %50 = vector.broadcast %cst_23 : f32 to vector<128x256xf32>
    %51 = arith.addf %50, %49 : vector<128x256xf32>
    %52 = arith.mulf %46, %51 : vector<128x256xf32>
    %53 = math.tanh %52 : vector<128x256xf32>
    %cst_24 = arith.constant 1.000000e+00 : f32
    %54 = vector.broadcast %cst_24 : f32 to vector<128x256xf32>
    %55 = arith.addf %54, %53 : vector<128x256xf32>
    %56 = arith.mulf %44, %55 : vector<128x256xf32>
    %cst_25 = arith.constant dense<0.000000e+00> : vector<128xf32>
    %57 = vector.multi_reduction <add>, %56, %cst_25 [1] : vector<128x256xf32> to vector<128xf32>
    %58 = vector.shape_cast %57 : vector<128xf32> to vector<128x1xf32>
    %cst_26 = arith.constant 3.906250e-03 : f32
    %59 = vector.broadcast %cst_26 : f32 to vector<128x1xf32>
    %60 = arith.mulf %58, %59 : vector<128x1xf32>
    %61 = vector.broadcast %c1_i32 : i32 to vector<1x128xi32>
    %62 = arith.cmpi eq, %0, %61 : vector<1x128xi32>
    %63 = vector.shape_cast %62 : vector<1x128xi1> to vector<1x128xi1>
    %64 = vector.broadcast %63 : vector<1x128xi1> to vector<128x128xi1>
    %65 = vector.shape_cast %60 : vector<128x1xf32> to vector<128x1xf32>
    %66 = vector.broadcast %65 : vector<128x1xf32> to vector<128x128xf32>
    %67 = arith.select %64, %66, %34 : vector<128x128xi1>, vector<128x128xf32>
    %c2_i32 = arith.constant 2 : i32
    %c0_27 = arith.constant 0 : index
    %c0_28 = arith.constant 0 : index
    %68 = vector.load %arg4[%c0_27, %c0_28] : memref<128x128xf32, #tpu.memory_space<vmem>>, vector<128x128xf32>
    %cst_29 = arith.constant dense<0.000000e+00> : vector<128x128xf32>
    %69 = tpu.matmul %67, %68, %cst_29 {dimension_numbers = #tpu.dot_dimension_numbers<[0], [0], [1], [1], [0, 1, 1, 1], [], []>} : vector<128x128xf32>, vector<128x128xf32>, vector<128x128xf32> -> vector<128x128xf32>
    %70 = vector.extract_strided_slice %69 {offsets = [0, 0], sizes = [2, 128], strides = [1, 1]} : vector<128x128xf32> to vector<2x128xf32>
    %c0_30 = arith.constant 0 : index
    %c0_31 = arith.constant 0 : index
    %71 = vector.load %arg5[%c0_30, %c0_31] : memref<1x128xf32, #tpu.memory_space<vmem>>, vector<1x128xf32>
    %72 = vector.broadcast %71 : vector<1x128xf32> to vector<2x128xf32>
    %73 = arith.addf %70, %72 : vector<2x128xf32>
    %cst_32 = arith.constant 5.000000e-01 : f32
    %74 = vector.broadcast %cst_32 : f32 to vector<2x128xf32>
    %75 = arith.mulf %74, %73 : vector<2x128xf32>
    %cst_33 = arith.constant 0.797884583 : f32
    %76 = vector.broadcast %cst_33 : f32 to vector<2x128xf32>
    %77 = arith.mulf %76, %73 : vector<2x128xf32>
    %cst_34 = arith.constant 4.471500e-02 : f32
    %78 = vector.broadcast %cst_34 : f32 to vector<2x128xf32>
    %79 = arith.mulf %78, %73 : vector<2x128xf32>
    %80 = arith.mulf %79, %73 : vector<2x128xf32>
    %cst_35 = arith.constant 1.000000e+00 : f32
    %81 = vector.broadcast %cst_35 : f32 to vector<2x128xf32>
    %82 = arith.addf %81, %80 : vector<2x128xf32>
    %83 = arith.mulf %77, %82 : vector<2x128xf32>
    %84 = math.tanh %83 : vector<2x128xf32>
    %cst_36 = arith.constant 1.000000e+00 : f32
    %85 = vector.broadcast %cst_36 : f32 to vector<2x128xf32>
    %86 = arith.addf %85, %84 : vector<2x128xf32>
    %87 = arith.mulf %75, %86 : vector<2x128xf32>
    %c0_37 = arith.constant 0 : index
    %c0_38 = arith.constant 0 : index
    %c0_39 = arith.constant 0 : index
    %88 = vector.load %arg6[%c0_37, %c0_38, %c0_39] : memref<1x2x128xf32, #tpu.memory_space<vmem>>, vector<1x2x128xf32>
    %89 = vector.shape_cast %88 : vector<1x2x128xf32> to vector<2x128xf32>
    %90 = vector.shape_cast %87 : vector<2x128xf32> to vector<1x2x128xf32>
    tpu.vector_store %arg6[%c0_37, %c0_38, %c0_39], %90 {strides = array<i32>} : memref<1x2x128xf32, #tpu.memory_space<vmem>>, vector<1x2x128xf32>,
    return
  }
  func.func @transform_0(%arg0: i32) -> (i32, i32, i32) {
    %c0_i32 = arith.constant 0 : i32
    %c0_i32_0 = arith.constant 0 : i32
    %c0_i32_1 = arith.constant 0 : i32
    return %arg0, %c0_i32, %c0_i32_0 : i32, i32, i32
  }
  func.func @transform_1(%arg0: i32) -> (i32, i32) {
    %c0_i32 = arith.constant 0 : i32
    %c0_i32_0 = arith.constant 0 : i32
    %c0_i32_1 = arith.constant 0 : i32
    return %c0_i32, %c0_i32_0 : i32, i32
  }
  func.func @transform_2(%arg0: i32) -> (i32, i32) {
    %c0_i32 = arith.constant 0 : i32
    %c0_i32_0 = arith.constant 0 : i32
    %c0_i32_1 = arith.constant 0 : i32
    return %c0_i32, %c0_i32_0 : i32, i32
  }
  func.func @transform_3(%arg0: i32) -> (i32, i32) {
    %c0_i32 = arith.constant 0 : i32
    %c0_i32_0 = arith.constant 0 : i32
    %c0_i32_1 = arith.constant 0 : i32
    return %c0_i32, %c0_i32_0 : i32, i32
  }
  func.func @transform_4(%arg0: i32) -> (i32, i32) {
    %c0_i32 = arith.constant 0 : i32
    %c0_i32_0 = arith.constant 0 : i32
    %c0_i32_1 = arith.constant 0 : i32
    return %c0_i32, %c0_i32_0 : i32, i32
  }
  func.func @transform_5(%arg0: i32) -> (i32, i32, i32) {
    %c0_i32 = arith.constant 0 : i32
    %c0_i32_0 = arith.constant 0 : i32
    %c0_i32_1 = arith.constant 0 : i32
    return %arg0, %c0_i32, %c0_i32_0 : i32, i32, i32
  }
}

</mosaic_0001>

<llo_original>
// kernel: tpu_custom_call.1
$region0: #{tpu_custom_call.1}
  #allocation0 [shape = 'u32[]', space=smem, size = 0x4, offset = 0x4, fixed_abs, tag = 'smem constant byte address 0x4 - core index']
  #allocation1 [shape = 'u32[72,128]{1,0:T(1,128)}', space=vmem, size = 0x9000, scoped, tag = 'internal scratch']
  %s0 = inlined_call_operand.hbm [shape: f32[8,128,256], index: 0, kind: input, shape index: {}]
  %s1 = inlined_call_operand.vmem [shape: f32[128,128], index: 1, kind: input, shape index: {}]
  %s2 = inlined_call_operand.vmem [shape: f32[128,1], index: 2, kind: input, shape index: {}]
  %s3 = inlined_call_operand.hbm [shape: f32[128,128], index: 3, kind: input, shape index: {}]
  %s4 = inlined_call_operand.vmem [shape: f32[1,128], index: 4, kind: input, shape index: {}]
  %s5 = inlined_call_operand.hbm [shape: f32[4,2,128], index: 5, kind: output, shape index: {}]
  %s6 = sld [smem:[#allocation0]]
  $region61: #{tpu_custom_call.1} parent=0
    _
  %s8 = ssub.s32 1, %s6
  %s9 = scalar_select 0, %s8, %s6
  $region1: #{tpu_custom_call.1} parent=0
    #allocation2 [shape = 'u8[524288]{0}', space=vmem, size = 0x80000, scoped, tag = 'input window, operand 0']
    #allocation3 [shape = 's32[2]{0}', space=sflag, size = 0x8, scoped, tag = 'scoped memory for tpu_custom_call.1']
    #allocation4 [shape = 's32[2]{0}', space=sflag, size = 0x8, scoped, tag = 'scoped memory for tpu_custom_call.1']
    #allocation5 [shape = 'u8[65536]{0}', space=vmem, size = 0x10000, scoped, tag = 'input window, operand 3, single buffered']
    #allocation6 [shape = 's32[1]{0}', space=sflag, size = 0x4, scoped, tag = 'scoped memory for tpu_custom_call.1']
    #allocation7 [shape = 'u8[2048]{0}', space=vmem, size = 0x800, scoped, tag = 'output window, operand 0']
    %10 = vsyncpa [#allocation3], 0
    %s11 = scalar_lea.sflag [#allocation3], 1
    %12 = vsyncpa %s11, 0
    %13 = vsyncpa [#allocation6], 0
    %14 = vsyncpa [#allocation4], 0
    %s15 = scalar_lea.sflag [#allocation4], 1
    %16 = vsyncpa %s15, 0
    loop: start=0, step=1, limit=6
    $region2: #{tpu_custom_call.1} parent=1 // loop_pre_header
      _
    $region3: #{tpu_custom_call.1} parent=1 // loop_header
      %s18 = sphi 0, %s22
      %p19 = scmp.ge.s32.totalorder %s18, 6
      %s28 = sphi 0, %s30
      %s31 = sphi 0, %s28
      %s32 = sphi 0, %s31
      %s48 = sphi 0, %s32
      %s52 = sphi 0, %s52
      %s54 = sphi 0, %s52
      %s55 = sphi 0, %s54
      %s69 = sphi 0, %s55
      %s73 = sphi 0, %s73
      %s75 = sphi 0, %s73
      %s76 = sphi 0, %s75
      %s90 = sphi 0, %s76
      %s94 = sphi 0, %s94
      %s96 = sphi 0, %s94
      %s97 = sphi 0, %s96
      %s111 = sphi 0, %s97
      %s115 = sphi 0, %s115
      %s117 = sphi 0, %s115
      %s118 = sphi 0, %s117
      %s132 = sphi 0, %s118
      %s138 = sphi 0, %s140
      %s141 = sphi 0, %s138
      %s142 = sphi 0, %s141
      %s158 = sphi 0, %s142
    $region4: #{tpu_custom_call.1} parent=1 // loop_header_branch
      %21 = sbr.rel (%p19) target = $region8
    $region5: #{tpu_custom_call.1} parent=1 // loop_body
      %s23 = ssub.s32 %s18, 1
      %s24 = ssub.s32 %s18, 2
      %s25 = sadd.s32 %s18, 1
      %s26 = ssub.s32 %s18, %s25
      %p27 = scmp.eq.s32.totalorder %s26, 0
      %s29 = sadd.s32 %s28, 1
      %s30 = scalar_select %p27, %s28, %s29
      %p33 = pneg %p27
      %p34 = scmp.eq.s32.totalorder %s18, 3
      %p35 = por %p33, %p34
      %p36 = scmp.ne.s32.totalorder %s28, %s31
      %p37 = scmp.eq.s32.totalorder %s18, 0
      %p38 = por %p36, %p37
      %p39 = scmp.ne.s32.totalorder %s28, %s31
      %p40 = scmp.eq.s32.totalorder %s23, 3
      %p41 = por %p39, %p40
      %p42 = scmp.ne.s32.totalorder %s31, %s32
      %p43 = scmp.eq.s32.totalorder %s23, 0
      %p44 = por %p42, %p43
      %p45 = scmp.ne.s32.totalorder %s31, %s32
      %p46 = scmp.eq.s32.totalorder %s24, 3
      %p47 = por %p45, %p46
      %p49 = scmp.ne.s32.totalorder %s32, %s48
      %p50 = scmp.eq.s32.totalorder %s24, 0
      %p51 = por %p49, %p50
      %s53 = sadd.s32 %s52, 1
      %p56 = scmp.eq.s32.totalorder %s18, 3
      %p57 = scmp.ne.s32.totalorder %s52, %s54
      %p58 = scmp.eq.s32.totalorder %s18, 0
      %p59 = por %p57, %p58
      %p60 = scmp.ne.s32.totalorder %s52, %s54
      %p61 = scmp.eq.s32.totalorder %s23, 3
      %p62 = por %p60, %p61
      %p63 = scmp.ne.s32.totalorder %s54, %s55
      %p64 = scmp.eq.s32.totalorder %s23, 0
      %p65 = por %p63, %p64
      %p66 = scmp.ne.s32.totalorder %s54, %s55
      %p67 = scmp.eq.s32.totalorder %s24, 3
      %p68 = por %p66, %p67
      %p70 = scmp.ne.s32.totalorder %s55, %s69
      %p71 = scmp.eq.s32.totalorder %s24, 0
      %p72 = por %p70, %p71
      %s74 = sadd.s32 %s73, 1
      %p77 = scmp.eq.s32.totalorder %s18, 3
      %p78 = scmp.ne.s32.totalorder %s73, %s75
      %p79 = scmp.eq.s32.totalorder %s18, 0
      %p80 = por %p78, %p79
      %p81 = scmp.ne.s32.totalorder %s73, %s75
      %p82 = scmp.eq.s32.totalorder %s23, 3
      %p83 = por %p81, %p82
      %p84 = scmp.ne.s32.totalorder %s75, %s76
      %p85 = scmp.eq.s32.totalorder %s23, 0
      %p86 = por %p84, %p85
      %p87 = scmp.ne.s32.totalorder %s75, %s76
      %p88 = scmp.eq.s32.totalorder %s24, 3
      %p89 = por %p87, %p88
      %p91 = scmp.ne.s32.totalorder %s76, %s90
      %p92 = scmp.eq.s32.totalorder %s24, 0
      %p93 = por %p91, %p92
      %s95 = sadd.s32 %s94, 1
      %p98 = scmp.eq.s32.totalorder %s18, 3
      %p99 = scmp.ne.s32.totalorder %s94, %s96
      %p100 = scmp.eq.s32.totalorder %s18, 0
      %p101 = por %p99, %p100
      %p102 = scmp.ne.s32.totalorder %s94, %s96
      %p103 = scmp.eq.s32.totalorder %s23, 3
      %p104 = por %p102, %p103
      %p105 = scmp.ne.s32.totalorder %s96, %s97
      %p106 = scmp.eq.s32.totalorder %s23, 0
      %p107 = por %p105, %p106
      %p108 = scmp.ne.s32.totalorder %s96, %s97
      %p109 = scmp.eq.s32.totalorder %s24, 3
      %p110 = por %p108, %p109
      %p112 = scmp.ne.s32.totalorder %s97, %s111
      %p113 = scmp.eq.s32.totalorder %s24, 0
      %p114 = por %p112, %p113
      %s116 = sadd.s32 %s115, 1
      %p119 = scmp.eq.s32.totalorder %s18, 3
      %p120 = scmp.ne.s32.totalorder %s115, %s117
      %p121 = scmp.eq.s32.totalorder %s18, 0
      %p122 = por %p120, %p121
      %p123 = scmp.ne.s32.totalorder %s115, %s117
      %p124 = scmp.eq.s32.totalorder %s23, 3
      %p125 = por %p123, %p124
      %p126 = scmp.ne.s32.totalorder %s117, %s118
      %p127 = scmp.eq.s32.totalorder %s23, 0
      %p128 = por %p126, %p127
      %p129 = scmp.ne.s32.totalorder %s117, %s118
      %p130 = scmp.eq.s32.totalorder %s24, 3
      %p131 = por %p129, %p130
      %p133 = scmp.ne.s32.totalorder %s118, %s132
      %p134 = scmp.eq.s32.totalorder %s24, 0
      %p135 = por %p133, %p134
      %s136 = ssub.s32 %s18, %s25
      %p137 = scmp.eq.s32.totalorder %s136, 0
      %s139 = sadd.s32 %s138, 1
      %s140 = scalar_select %p137, %s138, %s139
      %p143 = pneg %p137
      %p144 = scmp.eq.s32.totalorder %s18, 3
      %p145 = por %p143, %p144
      %p146 = scmp.ne.s32.totalorder %s138, %s141
      %p147 = scmp.eq.s32.totalorder %s18, 0
      %p148 = por %p146, %p147
      %p149 = scmp.ne.s32.totalorder %s138, %s141
      %p150 = scmp.eq.s32.totalorder %s23, 3
      %p151 = por %p149, %p150
      %p152 = scmp.ne.s32.totalorder %s141, %s142
      %p153 = scmp.eq.s32.totalorder %s23, 0
      %p154 = por %p152, %p153
      %p155 = scmp.ne.s32.totalorder %s141, %s142
      %p156 = scmp.eq.s32.totalorder %s24, 3
      %p157 = por %p155, %p156
      %p159 = scmp.ne.s32.totalorder %s142, %s158
      %p160 = scmp.eq.s32.totalorder %s24, 0
      %p161 = por %p159, %p160
      %p162 = scmp.le.s32.totalorder 1, %s18
      %p163 = scmp.lt.s32.totalorder %s18, 5
      %p164 = pnand %p162, %p163
      %p165 = pneg %p164
      // Predicated region
      $region9: #{tpu_custom_call.1} parent=5 // pred_check
        _
      $region10: #{tpu_custom_call.1} parent=5 // pred_check_branch
        %167 = sbr.rel (%p164) target = $region12
      $region11: #{tpu_custom_call.1} parent=5 // pred_region
        %s168 = ssub.s32 %s18, 1
        // Predicated region
        $region13: #{tpu_custom_call.1} parent=11 // pred_check
          %p169 = pneg %p65
        $region14: #{tpu_custom_call.1} parent=11 // pred_check_branch
          %171 = sbr.rel (%p169) target = $region16
        $region15: #{tpu_custom_call.1} parent=11 // pred_region
          _
        $region16: #{tpu_custom_call.1} parent=11 // pred_fallthru
          _
        // Predicated region
        $region17: #{tpu_custom_call.1} parent=11 // pred_check
          %p172 = pneg %p86
        $region18: #{tpu_custom_call.1} parent=11 // pred_check_branch
          %174 = sbr.rel (%p172) target = $region20
        $region19: #{tpu_custom_call.1} parent=11 // pred_region
          _
        $region20: #{tpu_custom_call.1} parent=11 // pred_fallthru
          _
        // Predicated region
        $region21: #{tpu_custom_call.1} parent=11 // pred_check
          %p175 = pneg %p107
        $region22: #{tpu_custom_call.1} parent=11 // pred_check_branch
          %177 = sbr.rel (%p175) target = $region24
        $region23: #{tpu_custom_call.1} parent=11 // pred_region
          %179 = vsyncadd [#allocation6], 0
          %s180 = sshll.u32 %s3, 4
          %s181 = int_to_ptr.hbm [resolvable:$true] %s180
          %s182 = sshll.u32 [#allocation5], 4
          %s183 = int_to_ptr.vmem [resolvable:$true] %s182
          %188 = dma.hbm_to_vmem [thread:$0]  %s181, 2048, %s183, [#allocation6], 128, 128, 8
        $region24: #{tpu_custom_call.1} parent=11 // pred_fallthru
          _
        // Predicated region
        $region25: #{tpu_custom_call.1} parent=11 // pred_check
          %p189 = pneg %p128
        $region26: #{tpu_custom_call.1} parent=11 // pred_check_branch
          %191 = sbr.rel (%p189) target = $region28
        $region27: #{tpu_custom_call.1} parent=11 // pred_region
          _
        $region28: #{tpu_custom_call.1} parent=11 // pred_fallthru
          _
      $region12: #{tpu_custom_call.1} parent=5 // pred_fallthru
        _
      %p192 = scmp.lt.s32.totalorder %s18, 4
      // Predicated region
      $region29: #{tpu_custom_call.1} parent=5 // pred_check
        %p193 = pneg %p192
      $region30: #{tpu_custom_call.1} parent=5 // pred_check_branch
        %195 = sbr.rel (%p193) target = $region32
      $region31: #{tpu_custom_call.1} parent=5 // pred_region
        // Predicated region
        $region33: #{tpu_custom_call.1} parent=31 // pred_check
          %p196 = pneg %p38
        $region34: #{tpu_custom_call.1} parent=31 // pred_check_branch
          %198 = sbr.rel (%p196) target = $region36
        $region35: #{tpu_custom_call.1} parent=31 // pred_region
          %s199 = sand.u32 %s28, 1
          %s200 = scalar_lea.sflag [#allocation3], %s199
          %s201 = sand.u32 %s28, 1
          %s202 = smul.addr %s201, 512
          %s203 = scalar_lea.vmem [#allocation2], %s202
          %s204 = smul.u32 2, %s18
          %206 = vsyncadd %s200, 0
          %s207 = smul.addr %s204, 32
          %s208 = smul.addr %s207, 8
          %s209 = scalar_lea.hbm %s0, %s208
          %s210 = sshll.u32 %s209, 4
          %s211 = int_to_ptr.hbm [resolvable:$true] %s210
          %s212 = sshll.u32 %s203, 4
          %s213 = int_to_ptr.vmem [resolvable:$true] %s212
          %218 = dma.hbm_to_vmem [thread:$0]  %s211, 8192, %s213, %s200, 256, 256, 16
        $region36: #{tpu_custom_call.1} parent=31 // pred_fallthru
          _
      $region32: #{tpu_custom_call.1} parent=5 // pred_fallthru
        _
      %p219 = scmp.le.s32.totalorder 1, %s18
      %p220 = scmp.lt.s32.totalorder %s18, 5
      %p221 = pnand %p219, %p220
      %p222 = pneg %p221
      // Predicated region
      $region37: #{tpu_custom_call.1} parent=5 // pred_check
        _
      $region38: #{tpu_custom_call.1} parent=5 // pred_check_branch
        %224 = sbr.rel (%p221) target = $region40
      $region39: #{tpu_custom_call.1} parent=5 // pred_region
        %s225 = ssub.s32 %s18, 1
        %s226 = sand.u32 %s31, 1
        %s227 = scalar_lea.sflag [#allocation3], %s226
        %s228 = sand.u32 %s31, 1
        %s229 = smul.addr %s228, 512
        %s230 = scalar_lea.vmem [#allocation2], %s229
        // Predicated region
        $region41: #{tpu_custom_call.1} parent=39 // pred_check
          %p231 = pneg %p44
        $region42: #{tpu_custom_call.1} parent=39 // pred_check_branch
          %233 = sbr.rel (%p231) target = $region44
        $region43: #{tpu_custom_call.1} parent=39 // pred_region
          %235 = dma.done %s227, 8192
        $region44: #{tpu_custom_call.1} parent=39 // pred_fallthru
          _
        // Predicated region
        $region45: #{tpu_custom_call.1} parent=39 // pred_check
          %p236 = pneg %p107
        $region46: #{tpu_custom_call.1} parent=39 // pred_check_branch
          %238 = sbr.rel (%p236) target = $region48
        $region47: #{tpu_custom_call.1} parent=39 // pred_region
          %240 = dma.done [#allocation6], 2048
        $region48: #{tpu_custom_call.1} parent=39 // pred_fallthru
          _
        %s241 = sand.u32 %s31, 1
        %s242 = scalar_lea.sflag [#allocation3], %s241
        %s243 = sand.u32 %s31, 1
        %s244 = smul.addr %s243, 512
        %s245 = scalar_lea.vmem [#allocation2], %s244
        %p246 = pneg %p44
        %p247 = pneg %p41
        %p248 = pneg %p65
        %p249 = pneg %p62
        %p250 = pneg %p86
        %p251 = pneg %p83
        %p252 = pneg %p107
        %p253 = pneg %p104
        %p254 = pneg %p128
        %p255 = pneg %p125
        %p256 = pneg %p154
        %p257 = pneg %p151
        %s258 = sand.u32 %s141, 1
        %s259 = scalar_lea.sflag [#allocation4], %s258
        %s260 = sand.u32 %s141, 1
        %s261 = smul.addr %s260, 2
        %s262 = scalar_lea.vmem [#allocation7], %s261
        %s263 = smul.u32 2, %s23
        %v264 = vlaneseq
        %v265 = vand.u32 %v264, 127
        %v266 = vld [vmem:[%s1] sm:$0xff]
        %v267 = vld [vmem:[%s1 + $0x8] sm:$0xff]
        %v268 = vld [vmem:[%s1 + $0x10] sm:$0xff]
        %v269 = vld [vmem:[%s1 + $0x18] sm:$0xff]
        %v270 = vld [vmem:[%s1 + $0x20] sm:$0xff]
        %v271 = vld [vmem:[%s1 + $0x28] sm:$0xff]
        %v272 = vld [vmem:[%s1 + $0x30] sm:$0xff]
        %v273 = vld [vmem:[%s1 + $0x38] sm:$0xff]
        %v274 = vld [vmem:[%s1 + $0x40] sm:$0xff]
        %v275 = vld [vmem:[%s1 + $0x48] sm:$0xff]
        %v276 = vld [vmem:[%s1 + $0x50] sm:$0xff]
        %v277 = vld [vmem:[%s1 + $0x58] sm:$0xff]
        %v278 = vld [vmem:[%s1 + $0x60] sm:$0xff]
        %v279 = vld [vmem:[%s1 + $0x68] sm:$0xff]
        %v280 = vld [vmem:[%s1 + $0x70] sm:$0xff]
        %v281 = vld [vmem:[%s1 + $0x78] sm:$0xff]
        %v282 = vld [vmem:[%s230] sm:$0xff]
        %v283 = vld [vmem:[%s230 + $0x8] sm:$0xff]
        %v284 = vld [vmem:[%s230 + $0x10] sm:$0xff]
        %v285 = vld [vmem:[%s230 + $0x18] sm:$0xff]
        %v286 = vld [vmem:[%s230 + $0x20] sm:$0xff]
        %v287 = vld [vmem:[%s230 + $0x28] sm:$0xff]
        %v288 = vld [vmem:[%s230 + $0x30] sm:$0xff]
        %v289 = vld [vmem:[%s230 + $0x38] sm:$0xff]
        %v290 = vld [vmem:[%s230 + $0x40] sm:$0xff]
        %v291 = vld [vmem:[%s230 + $0x48] sm:$0xff]
        %v292 = vld [vmem:[%s230 + $0x50] sm:$0xff]
        %v293 = vld [vmem:[%s230 + $0x58] sm:$0xff]
        %v294 = vld [vmem:[%s230 + $0x60] sm:$0xff]
        %v295 = vld [vmem:[%s230 + $0x68] sm:$0xff]
        %v296 = vld [vmem:[%s230 + $0x70] sm:$0xff]
        %v297 = vld [vmem:[%s230 + $0x78] sm:$0xff]
        %v298 = vld [vmem:[%s230 + $0x80] sm:$0xff]
        %v299 = vld [vmem:[%s230 + $0x88] sm:$0xff]
        %v300 = vld [vmem:[%s230 + $0x90] sm:$0xff]
        %v301 = vld [vmem:[%s230 + $0x98] sm:$0xff]
        %v302 = vld [vmem:[%s230 + $0xa0] sm:$0xff]
        %v303 = vld [vmem:[%s230 + $0xa8] sm:$0xff]
        %v304 = vld [vmem:[%s230 + $0xb0] sm:$0xff]
        %v305 = vld [vmem:[%s230 + $0xb8] sm:$0xff]
        %v306 = vld [vmem:[%s230 + $0xc0] sm:$0xff]
        %v307 = vld [vmem:[%s230 + $0xc8] sm:$0xff]
        %v308 = vld [vmem:[%s230 + $0xd0] sm:$0xff]
        %v309 = vld [vmem:[%s230 + $0xd8] sm:$0xff]
        %v310 = vld [vmem:[%s230 + $0xe0] sm:$0xff]
        %v311 = vld [vmem:[%s230 + $0xe8] sm:$0xff]
        %v312 = vld [vmem:[%s230 + $0xf0] sm:$0xff]
        %v313 = vld [vmem:[%s230 + $0xf8] sm:$0xff]
        %v314 = vld [vmem:[%s2] sm:$0xff]
        %v315 = vld [vmem:[%s2 + $0x8] sm:$0xff]
        %v316 = vld [vmem:[%s2 + $0x10] sm:$0xff]
        %v317 = vld [vmem:[%s2 + $0x18] sm:$0xff]
        %v318 = vld [vmem:[%s2 + $0x20] sm:$0xff]
        %v319 = vld [vmem:[%s2 + $0x28] sm:$0xff]
        %v320 = vld [vmem:[%s2 + $0x30] sm:$0xff]
        %v321 = vld [vmem:[%s2 + $0x38] sm:$0xff]
        %v322 = vld [vmem:[%s2 + $0x40] sm:$0xff]
        %v323 = vld [vmem:[%s2 + $0x48] sm:$0xff]
        %v324 = vld [vmem:[%s2 + $0x50] sm:$0xff]
        %v325 = vld [vmem:[%s2 + $0x58] sm:$0xff]
        %v326 = vld [vmem:[%s2 + $0x60] sm:$0xff]
        %v327 = vld [vmem:[%s2 + $0x68] sm:$0xff]
        %v328 = vld [vmem:[%s2 + $0x70] sm:$0xff]
        %v329 = vld [vmem:[%s2 + $0x78] sm:$0xff]
        %331 = vset.pattern.permute.xlu0 0
        %332 = vperm.xlu0 %331, %v314
        %v333 = vpop.permute.xlu0 %332
        %336 = vset.pattern.permute.xlu0 0
        %337 = vperm.xlu0 %336, %v315
        %v338 = vpop.permute.xlu0 %337
        %341 = vset.pattern.permute.xlu0 0
        %342 = vperm.xlu0 %341, %v316
        %v343 = vpop.permute.xlu0 %342
        %346 = vset.pattern.permute.xlu0 0
        %347 = vperm.xlu0 %346, %v317
        %v348 = vpop.permute.xlu0 %347
        %351 = vset.pattern.permute.xlu0 0
        %352 = vperm.xlu0 %351, %v318
        %v353 = vpop.permute.xlu0 %352
        %356 = vset.pattern.permute.xlu0 0
        %357 = vperm.xlu0 %356, %v319
        %v358 = vpop.permute.xlu0 %357
        %361 = vset.pattern.permute.xlu0 0
        %362 = vperm.xlu0 %361, %v320
        %v363 = vpop.permute.xlu0 %362
        %366 = vset.pattern.permute.xlu0 0
        %367 = vperm.xlu0 %366, %v321
        %v368 = vpop.permute.xlu0 %367
        %371 = vset.pattern.permute.xlu0 0
        %372 = vperm.xlu0 %371, %v322
        %v373 = vpop.permute.xlu0 %372
        %376 = vset.pattern.permute.xlu0 0
        %377 = vperm.xlu0 %376, %v323
        %v378 = vpop.permute.xlu0 %377
        %381 = vset.pattern.permute.xlu0 0
        %382 = vperm.xlu0 %381, %v324
        %v383 = vpop.permute.xlu0 %382
        %386 = vset.pattern.permute.xlu0 0
        %387 = vperm.xlu0 %386, %v325
        %v388 = vpop.permute.xlu0 %387
        %391 = vset.pattern.permute.xlu0 0
        %392 = vperm.xlu0 %391, %v326
        %v393 = vpop.permute.xlu0 %392
        %396 = vset.pattern.permute.xlu0 0
        %397 = vperm.xlu0 %396, %v327
        %v398 = vpop.permute.xlu0 %397
        %401 = vset.pattern.permute.xlu0 0
        %402 = vperm.xlu0 %401, %v328
        %v403 = vpop.permute.xlu0 %402
        %406 = vset.pattern.permute.xlu0 0
        %407 = vperm.xlu0 %406, %v329
        %v408 = vpop.permute.xlu0 %407
        %410 = vmatpush.msra.mxu0 %v312
        %411 = vmatpush.msra.mxu0 %v310
        %412 = vmatpush.msra.mxu0 %v308
        %413 = vmatpush.msra.mxu0 %v306
        %414 = vmatpush.msra.mxu0 %v304
        %415 = vmatpush.msra.mxu0 %v302
        %416 = vmatpush.msra.mxu0 %v300
        %417 = vmatpush.msra.mxu0 %v298
        %418 = vmatpush.msra.mxu0 %v296
        %419 = vmatpush.msra.mxu0 %v294
        %420 = vmatpush.msra.mxu0 %v292
        %421 = vmatpush.msra.mxu0 %v290
        %422 = vmatpush.msra.mxu0 %v288
        %423 = vmatpush.msra.mxu0 %v286
        %424 = vmatpush.msra.mxu0 %v284
        %425 = vmatpush.msra.mxu0 %v282
        %426 = vmatmul.f32.gmra.mxu0 %v266
        %v427 = vpop.f32.mrf.mxu0
        %v428 = vadd.f32 %v333, %v427
        %429 = vmatmul.f32.gmra.mxu0 %v267
        %v430 = vpop.f32.mrf.mxu0
        %v431 = vadd.f32 %v338, %v430
        %432 = vmatmul.f32.gmra.mxu0 %v268
        %v433 = vpop.f32.mrf.mxu0
        %v434 = vadd.f32 %v343, %v433
        %435 = vmatmul.f32.gmra.mxu0 %v269
        %v436 = vpop.f32.mrf.mxu0
        %v437 = vadd.f32 %v348, %v436
        %438 = vmatmul.f32.gmra.mxu0 %v270
        %v439 = vpop.f32.mrf.mxu0
        %v440 = vadd.f32 %v353, %v439
        %441 = vmatmul.f32.gmra.mxu0 %v271
        %v442 = vpop.f32.mrf.mxu0
        %v443 = vadd.f32 %v358, %v442
        %444 = vmatmul.f32.gmra.mxu0 %v272
        %v445 = vpop.f32.mrf.mxu0
        %v446 = vadd.f32 %v363, %v445
        %447 = vmatmul.f32.gmra.mxu0 %v273
        %v448 = vpop.f32.mrf.mxu0
        %v449 = vadd.f32 %v368, %v448
        %450 = vmatmul.f32.gmra.mxu0 %v274
        %v451 = vpop.f32.mrf.mxu0
        %v452 = vadd.f32 %v373, %v451
        %453 = vmatmul.f32.gmra.mxu0 %v275
        %v454 = vpop.f32.mrf.mxu0
        %v455 = vadd.f32 %v378, %v454
        %456 = vmatmul.f32.gmra.mxu0 %v276
        %v457 = vpop.f32.mrf.mxu0
        %v458 = vadd.f32 %v383, %v457
        %459 = vmatmul.f32.gmra.mxu0 %v277
        %v460 = vpop.f32.mrf.mxu0
        %v461 = vadd.f32 %v388, %v460
        %462 = vmatmul.f32.gmra.mxu0 %v278
        %v463 = vpop.f32.mrf.mxu0
        %v464 = vadd.f32 %v393, %v463
        %465 = vmatmul.f32.gmra.mxu0 %v279
        %v466 = vpop.f32.mrf.mxu0
        %v467 = vadd.f32 %v398, %v466
        %468 = vmatmul.f32.gmra.mxu0 %v280
        %v469 = vpop.f32.mrf.mxu0
        %v470 = vadd.f32 %v403, %v469
        %471 = vmatmul.f32.gmra.mxu0 %v281
        %v472 = vpop.f32.mrf.mxu0
        %v473 = vadd.f32 %v408, %v472
        %474 = vdwg.mxu0
        %475 = vmatpush.msra.mxu0 %v313
        %476 = vmatpush.msra.mxu0 %v311
        %477 = vmatpush.msra.mxu0 %v309
        %478 = vmatpush.msra.mxu0 %v307
        %479 = vmatpush.msra.mxu0 %v305
        %480 = vmatpush.msra.mxu0 %v303
        %481 = vmatpush.msra.mxu0 %v301
        %482 = vmatpush.msra.mxu0 %v299
        %483 = vmatpush.msra.mxu0 %v297
        %484 = vmatpush.msra.mxu0 %v295
        %485 = vmatpush.msra.mxu0 %v293
        %486 = vmatpush.msra.mxu0 %v291
        %487 = vmatpush.msra.mxu0 %v289
        %488 = vmatpush.msra.mxu0 %v287
        %489 = vmatpush.msra.mxu0 %v285
        %490 = vmatpush.msra.mxu0 %v283
        %491 = vmatmul.f32.gmra.mxu0 %v266
        %v492 = vpop.f32.mrf.mxu0
        %v493 = vadd.f32 %v333, %v492
        %494 = vmatmul.f32.gmra.mxu0 %v267
        %v495 = vpop.f32.mrf.mxu0
        %v496 = vadd.f32 %v338, %v495
        %497 = vmatmul.f32.gmra.mxu0 %v268
        %v498 = vpop.f32.mrf.mxu0
        %v499 = vadd.f32 %v343, %v498
        %500 = vmatmul.f32.gmra.mxu0 %v269
        %v501 = vpop.f32.mrf.mxu0
        %v502 = vadd.f32 %v348, %v501
        %503 = vmatmul.f32.gmra.mxu0 %v270
        %v504 = vpop.f32.mrf.mxu0
        %v505 = vadd.f32 %v353, %v504
        %506 = vmatmul.f32.gmra.mxu0 %v271
        %v507 = vpop.f32.mrf.mxu0
        %v508 = vadd.f32 %v358, %v507
        %509 = vmatmul.f32.gmra.mxu0 %v272
        %v510 = vpop.f32.mrf.mxu0
        %v511 = vadd.f32 %v363, %v510
        %512 = vmatmul.f32.gmra.mxu0 %v273
        %v513 = vpop.f32.mrf.mxu0
        %v514 = vadd.f32 %v368, %v513
        %515 = vmatmul.f32.gmra.mxu0 %v274
        %v516 = vpop.f32.mrf.mxu0
        %v517 = vadd.f32 %v373, %v516
        %518 = vmatmul.f32.gmra.mxu0 %v275
        %v519 = vpop.f32.mrf.mxu0
        %v520 = vadd.f32 %v378, %v519
        %521 = vmatmul.f32.gmra.mxu0 %v276
        %v522 = vpop.f32.mrf.mxu0
        %v523 = vadd.f32 %v383, %v522
        %524 = vmatmul.f32.gmra.mxu0 %v277
        %v525 = vpop.f32.mrf.mxu0
        %v526 = vadd.f32 %v388, %v525
        %527 = vmatmul.f32.gmra.mxu0 %v278
        %v528 = vpop.f32.mrf.mxu0
        %v529 = vadd.f32 %v393, %v528
        %530 = vmatmul.f32.gmra.mxu0 %v279
        %v531 = vpop.f32.mrf.mxu0
        %v532 = vadd.f32 %v398, %v531
        %533 = vmatmul.f32.gmra.mxu0 %v280
        %v534 = vpop.f32.mrf.mxu0
        %v535 = vadd.f32 %v403, %v534
        %536 = vmatmul.f32.gmra.mxu0 %v281
        %v537 = vpop.f32.mrf.mxu0
        %v538 = vadd.f32 %v408, %v537
        %539 = vdwg.mxu0
        %v540 = vmul.f32 %v428, 0.5
        %v541 = vmul.f32 %v493, 0.5
        %v542 = vmul.f32 %v431, 0.5
        %v543 = vmul.f32 %v496, 0.5
        %v544 = vmul.f32 %v434, 0.5
        %v545 = vmul.f32 %v499, 0.5
        %v546 = vmul.f32 %v437, 0.5
        %v547 = vmul.f32 %v502, 0.5
        %v548 = vmul.f32 %v440, 0.5
        %v549 = vmul.f32 %v505, 0.5
        %v550 = vmul.f32 %v443, 0.5
        %v551 = vmul.f32 %v508, 0.5
        %v552 = vmul.f32 %v446, 0.5
        %v553 = vmul.f32 %v511, 0.5
        %v554 = vmul.f32 %v449, 0.5
        %v555 = vmul.f32 %v514, 0.5
        %v556 = vmul.f32 %v452, 0.5
        %v557 = vmul.f32 %v517, 0.5
        %v558 = vmul.f32 %v455, 0.5
        %v559 = vmul.f32 %v520, 0.5
        %v560 = vmul.f32 %v458, 0.5
        %v561 = vmul.f32 %v523, 0.5
        %v562 = vmul.f32 %v461, 0.5
        %v563 = vmul.f32 %v526, 0.5
        %v564 = vmul.f32 %v464, 0.5
        %v565 = vmul.f32 %v529, 0.5
        %v566 = vmul.f32 %v467, 0.5
        %v567 = vmul.f32 %v532, 0.5
        %v568 = vmul.f32 %v470, 0.5
        %v569 = vmul.f32 %v535, 0.5
        %v570 = vmul.f32 %v473, 0.5
        %v571 = vmul.f32 %v538, 0.5
        %v572 = vmul.f32 %v428, 0.7978846
        %v573 = vmul.f32 %v493, 0.7978846
        %v574 = vmul.f32 %v431, 0.7978846
        %v575 = vmul.f32 %v496, 0.7978846
        %v576 = vmul.f32 %v434, 0.7978846
        %v577 = vmul.f32 %v499, 0.7978846
        %v578 = vmul.f32 %v437, 0.7978846
        %v579 = vmul.f32 %v502, 0.7978846
        %v580 = vmul.f32 %v440, 0.7978846
        %v581 = vmul.f32 %v505, 0.7978846
        %v582 = vmul.f32 %v443, 0.7978846
        %v583 = vmul.f32 %v508, 0.7978846
        %v584 = vmul.f32 %v446, 0.7978846
        %v585 = vmul.f32 %v511, 0.7978846
        %v586 = vmul.f32 %v449, 0.7978846
        %v587 = vmul.f32 %v514, 0.7978846
        %v588 = vmul.f32 %v452, 0.7978846
        %v589 = vmul.f32 %v517, 0.7978846
        %v590 = vmul.f32 %v455, 0.7978846
        %v591 = vmul.f32 %v520, 0.7978846
        %v592 = vmul.f32 %v458, 0.7978846
        %v593 = vmul.f32 %v523, 0.7978846
        %v594 = vmul.f32 %v461, 0.7978846
        %v595 = vmul.f32 %v526, 0.7978846
        %v596 = vmul.f32 %v464, 0.7978846
        %v597 = vmul.f32 %v529, 0.7978846
        %v598 = vmul.f32 %v467, 0.7978846
        %v599 = vmul.f32 %v532, 0.7978846
        %v600 = vmul.f32 %v470, 0.7978846
        %v601 = vmul.f32 %v535, 0.7978846
        %v602 = vmul.f32 %v473, 0.7978846
        %v603 = vmul.f32 %v538, 0.7978846
        %v604 = vmul.f32 %v428, 0.044715
        %v605 = vmul.f32 %v493, 0.044715
        %v606 = vmul.f32 %v431, 0.044715
        %v607 = vmul.f32 %v496, 0.044715
        %v608 = vmul.f32 %v434, 0.044715
        %v609 = vmul.f32 %v499, 0.044715
        %v610 = vmul.f32 %v437, 0.044715
        %v611 = vmul.f32 %v502, 0.044715
        %v612 = vmul.f32 %v440, 0.044715
        %v613 = vmul.f32 %v505, 0.044715
        %v614 = vmul.f32 %v443, 0.044715
        %v615 = vmul.f32 %v508, 0.044715
        %v616 = vmul.f32 %v446, 0.044715
        %v617 = vmul.f32 %v511, 0.044715
        %v618 = vmul.f32 %v449, 0.044715
        %v619 = vmul.f32 %v514, 0.044715
        %v620 = vmul.f32 %v452, 0.044715
        %v621 = vmul.f32 %v517, 0.044715
        %v622 = vmul.f32 %v455, 0.044715
        %v623 = vmul.f32 %v520, 0.044715
        %v624 = vmul.f32 %v458, 0.044715
        %v625 = vmul.f32 %v523, 0.044715
        %v626 = vmul.f32 %v461, 0.044715
        %v627 = vmul.f32 %v526, 0.044715
        %v628 = vmul.f32 %v464, 0.044715
        %v629 = vmul.f32 %v529, 0.044715
        %v630 = vmul.f32 %v467, 0.044715
        %v631 = vmul.f32 %v532, 0.044715
        %v632 = vmul.f32 %v470, 0.044715
        %v633 = vmul.f32 %v535, 0.044715
        %v634 = vmul.f32 %v473, 0.044715
        %v635 = vmul.f32 %v538, 0.044715
        %v636 = vmul.f32 %v604, %v428
        %v637 = vmul.f32 %v605, %v493
        %v638 = vmul.f32 %v606, %v431
        %v639 = vmul.f32 %v607, %v496
        %v640 = vmul.f32 %v608, %v434
        %v641 = vmul.f32 %v609, %v499
        %v642 = vmul.f32 %v610, %v437
        %v643 = vmul.f32 %v611, %v502
        %v644 = vmul.f32 %v612, %v440
        %v645 = vmul.f32 %v613, %v505
        %v646 = vmul.f32 %v614, %v443
        %v647 = vmul.f32 %v615, %v508
        %v648 = vmul.f32 %v616, %v446
        %v649 = vmul.f32 %v617, %v511
        %v650 = vmul.f32 %v618, %v449
        %v651 = vmul.f32 %v619, %v514
        %v652 = vmul.f32 %v620, %v452
        %v653 = vmul.f32 %v621, %v517
        %v654 = vmul.f32 %v622, %v455
        %v655 = vmul.f32 %v623, %v520
        %v656 = vmul.f32 %v624, %v458
        %v657 = vmul.f32 %v625, %v523
        %v658 = vmul.f32 %v626, %v461
        %v659 = vmul.f32 %v627, %v526
        %v660 = vmul.f32 %v628, %v464
        %v661 = vmul.f32 %v629, %v529
        %v662 = vmul.f32 %v630, %v467
        %v663 = vmul.f32 %v631, %v532
        %v664 = vmul.f32 %v632, %v470
        %v665 = vmul.f32 %v633, %v535
        %v666 = vmul.f32 %v634, %v473
        %v667 = vmul.f32 %v635, %v538
        %v668 = vadd.f32 %v636, 1.0
        %v669 = vadd.f32 %v637, 1.0
        %v670 = vadd.f32 %v638, 1.0
        %v671 = vadd.f32 %v639, 1.0
        %v672 = vadd.f32 %v640, 1.0
        %v673 = vadd.f32 %v641, 1.0
        %v674 = vadd.f32 %v642, 1.0
        %v675 = vadd.f32 %v643, 1.0
        %v676 = vadd.f32 %v644, 1.0
        %v677 = vadd.f32 %v645, 1.0
        %v678 = vadd.f32 %v646, 1.0
        %v679 = vadd.f32 %v647, 1.0
        %v680 = vadd.f32 %v648, 1.0
        %v681 = vadd.f32 %v649, 1.0
        %v682 = vadd.f32 %v650, 1.0
        %v683 = vadd.f32 %v651, 1.0
        %v684 = vadd.f32 %v652, 1.0
        %v685 = vadd.f32 %v653, 1.0
        %v686 = vadd.f32 %v654, 1.0
        %v687 = vadd.f32 %v655, 1.0
        %v688 = vadd.f32 %v656, 1.0
        %v689 = vadd.f32 %v657, 1.0
        %v690 = vadd.f32 %v658, 1.0
        %v691 = vadd.f32 %v659, 1.0
        %v692 = vadd.f32 %v660, 1.0
        %v693 = vadd.f32 %v661, 1.0
        %v694 = vadd.f32 %v662, 1.0
        %v695 = vadd.f32 %v663, 1.0
        %v696 = vadd.f32 %v664, 1.0
        %v697 = vadd.f32 %v665, 1.0
        %v698 = vadd.f32 %v666, 1.0
        %v699 = vadd.f32 %v667, 1.0
        %v700 = vmul.f32 %v572, %v668
        %v701 = vmul.f32 %v573, %v669
        %v702 = vmul.f32 %v574, %v670
        %v703 = vmul.f32 %v575, %v671
        %v704 = vmul.f32 %v576, %v672
        %v705 = vmul.f32 %v577, %v673
        %v706 = vmul.f32 %v578, %v674
        %v707 = vmul.f32 %v579, %v675
        %v708 = vmul.f32 %v580, %v676
        %v709 = vmul.f32 %v581, %v677
        %v710 = vmul.f32 %v582, %v678
        %v711 = vmul.f32 %v583, %v679
        %v712 = vmul.f32 %v584, %v680
        %v713 = vmul.f32 %v585, %v681
        %v714 = vmul.f32 %v586, %v682
        %v715 = vmul.f32 %v587, %v683
        %v716 = vmul.f32 %v588, %v684
        %v717 = vmul.f32 %v589, %v685
        %v718 = vmul.f32 %v590, %v686
        %v719 = vmul.f32 %v591, %v687
        %v720 = vmul.f32 %v592, %v688
        %v721 = vmul.f32 %v593, %v689
        %v722 = vmul.f32 %v594, %v690
        %v723 = vmul.f32 %v595, %v691
        %v724 = vmul.f32 %v596, %v692
        %v725 = vmul.f32 %v597, %v693
        %v726 = vmul.f32 %v598, %v694
        %v727 = vmul.f32 %v599, %v695
        %v728 = vmul.f32 %v600, %v696
        %v729 = vmul.f32 %v601, %v697
        %v730 = vmul.f32 %v602, %v698
        %v731 = vmul.f32 %v603, %v699
        %v732 = vtanh.pop %v700
        %v733 = vtanh.pop %v701
        %v734 = vtanh.pop %v702
        %v735 = vtanh.pop %v703
        %v736 = vtanh.pop %v704
        %v737 = vtanh.pop %v705
        %v738 = vtanh.pop %v706
        %v739 = vtanh.pop %v707
        %v740 = vtanh.pop %v708
        %v741 = vtanh.pop %v709
        %v742 = vtanh.pop %v710
        %v743 = vtanh.pop %v711
        %v744 = vtanh.pop %v712
        %v745 = vtanh.pop %v713
        %v746 = vtanh.pop %v714
        %v747 = vtanh.pop %v715
        %v748 = vtanh.pop %v716
        %v749 = vtanh.pop %v717
        %v750 = vtanh.pop %v718
        %v751 = vtanh.pop %v719
        %v752 = vtanh.pop %v720
        %v753 = vtanh.pop %v721
        %v754 = vtanh.pop %v722
        %v755 = vtanh.pop %v723
        %v756 = vtanh.pop %v724
        %v757 = vtanh.pop %v725
        %v758 = vtanh.pop %v726
        %v759 = vtanh.pop %v727
        %v760 = vtanh.pop %v728
        %v761 = vtanh.pop %v729
        %v762 = vtanh.pop %v730
        %v763 = vtanh.pop %v731
        %v764 = vadd.f32 %v732, 1.0
        %v765 = vadd.f32 %v733, 1.0
        %v766 = vadd.f32 %v734, 1.0
        %v767 = vadd.f32 %v735, 1.0
        %v768 = vadd.f32 %v736, 1.0
        %v769 = vadd.f32 %v737, 1.0
        %v770 = vadd.f32 %v738, 1.0
        %v771 = vadd.f32 %v739, 1.0
        %v772 = vadd.f32 %v740, 1.0
        %v773 = vadd.f32 %v741, 1.0
        %v774 = vadd.f32 %v742, 1.0
        %v775 = vadd.f32 %v743, 1.0
        %v776 = vadd.f32 %v744, 1.0
        %v777 = vadd.f32 %v745, 1.0
        %v778 = vadd.f32 %v746, 1.0
        %v779 = vadd.f32 %v747, 1.0
        %v780 = vadd.f32 %v748, 1.0
        %v781 = vadd.f32 %v749, 1.0
        %v782 = vadd.f32 %v750, 1.0
        %v783 = vadd.f32 %v751, 1.0
        %v784 = vadd.f32 %v752, 1.0
        %v785 = vadd.f32 %v753, 1.0
        %v786 = vadd.f32 %v754, 1.0
        %v787 = vadd.f32 %v755, 1.0
        %v788 = vadd.f32 %v756, 1.0
        %v789 = vadd.f32 %v757, 1.0
        %v790 = vadd.f32 %v758, 1.0
        %v791 = vadd.f32 %v759, 1.0
        %v792 = vadd.f32 %v760, 1.0
        %v793 = vadd.f32 %v761, 1.0
        %v794 = vadd.f32 %v762, 1.0
        %v795 = vadd.f32 %v763, 1.0
        %v796 = vmul.f32 %v540, %v764
        %v797 = vmul.f32 %v541, %v765
        %v798 = vmul.f32 %v542, %v766
        %v799 = vmul.f32 %v543, %v767
        %v800 = vmul.f32 %v544, %v768
        %v801 = vmul.f32 %v545, %v769
        %v802 = vmul.f32 %v546, %v770
        %v803 = vmul.f32 %v547, %v771
        %v804 = vmul.f32 %v548, %v772
        %v805 = vmul.f32 %v549, %v773
        %v806 = vmul.f32 %v550, %v774
        %v807 = vmul.f32 %v551, %v775
        %v808 = vmul.f32 %v552, %v776
        %v809 = vmul.f32 %v553, %v777
        %v810 = vmul.f32 %v554, %v778
        %v811 = vmul.f32 %v555, %v779
        %v812 = vmul.f32 %v556, %v780
        %v813 = vmul.f32 %v557, %v781
        %v814 = vmul.f32 %v558, %v782
        %v815 = vmul.f32 %v559, %v783
        %v816 = vmul.f32 %v560, %v784
        %v817 = vmul.f32 %v561, %v785
        %v818 = vmul.f32 %v562, %v786
        %v819 = vmul.f32 %v563, %v787
        %v820 = vmul.f32 %v564, %v788
        %v821 = vmul.f32 %v565, %v789
        %v822 = vmul.f32 %v566, %v790
        %v823 = vmul.f32 %v567, %v791
        %v824 = vmul.f32 %v568, %v792
        %v825 = vmul.f32 %v569, %v793
        %v826 = vmul.f32 %v570, %v794
        %v827 = vmul.f32 %v571, %v795
        %v828 = vadd.f32 %v796, %v797
        %829 = vadd.xlane.f32.xlu0 %v828
        %v830 = vpop.xlane.xlu0 %829
        %v831 = vadd.f32 %v798, %v799
        %832 = vadd.xlane.f32.xlu0 %v831
        %v833 = vpop.xlane.xlu0 %832
        %v834 = vadd.f32 %v800, %v801
        %835 = vadd.xlane.f32.xlu0 %v834
        %v836 = vpop.xlane.xlu0 %835
        %v837 = vadd.f32 %v802, %v803
        %838 = vadd.xlane.f32.xlu0 %v837
        %v839 = vpop.xlane.xlu0 %838
        %v840 = vadd.f32 %v804, %v805
        %841 = vadd.xlane.f32.xlu0 %v840
        %v842 = vpop.xlane.xlu0 %841
        %v843 = vadd.f32 %v806, %v807
        %844 = vadd.xlane.f32.xlu0 %v843
        %v845 = vpop.xlane.xlu0 %844
        %v846 = vadd.f32 %v808, %v809
        %847 = vadd.xlane.f32.xlu0 %v846
        %v848 = vpop.xlane.xlu0 %847
        %v849 = vadd.f32 %v810, %v811
        %850 = vadd.xlane.f32.xlu0 %v849
        %v851 = vpop.xlane.xlu0 %850
        %v852 = vadd.f32 %v812, %v813
        %853 = vadd.xlane.f32.xlu0 %v852
        %v854 = vpop.xlane.xlu0 %853
        %v855 = vadd.f32 %v814, %v815
        %856 = vadd.xlane.f32.xlu0 %v855
        %v857 = vpop.xlane.xlu0 %856
        %v858 = vadd.f32 %v816, %v817
        %859 = vadd.xlane.f32.xlu0 %v858
        %v860 = vpop.xlane.xlu0 %859
        %v861 = vadd.f32 %v818, %v819
        %862 = vadd.xlane.f32.xlu0 %v861
        %v863 = vpop.xlane.xlu0 %862
        %v864 = vadd.f32 %v820, %v821
        %865 = vadd.xlane.f32.xlu0 %v864
        %v866 = vpop.xlane.xlu0 %865
        %v867 = vadd.f32 %v822, %v823
        %868 = vadd.xlane.f32.xlu0 %v867
        %v869 = vpop.xlane.xlu0 %868
        %v870 = vadd.f32 %v824, %v825
        %871 = vadd.xlane.f32.xlu0 %v870
        %v872 = vpop.xlane.xlu0 %871
        %v873 = vadd.f32 %v826, %v827
        %874 = vadd.xlane.f32.xlu0 %v873
        %v875 = vpop.xlane.xlu0 %874
        %v876 = vmul.f32 %v830, 0.00390625
        %v877 = vmul.f32 %v833, 0.00390625
        %v878 = vmul.f32 %v836, 0.00390625
        %v879 = vmul.f32 %v839, 0.00390625
        %v880 = vmul.f32 %v842, 0.00390625
        %v881 = vmul.f32 %v845, 0.00390625
        %v882 = vmul.f32 %v848, 0.00390625
        %v883 = vmul.f32 %v851, 0.00390625
        %v884 = vmul.f32 %v854, 0.00390625
        %v885 = vmul.f32 %v857, 0.00390625
        %v886 = vmul.f32 %v860, 0.00390625
        %v887 = vmul.f32 %v863, 0.00390625
        %v888 = vmul.f32 %v866, 0.00390625
        %v889 = vmul.f32 %v869, 0.00390625
        %v890 = vmul.f32 %v872, 0.00390625
        %v891 = vmul.f32 %v875, 0.00390625
        %vm892 = vcmp.eq.s32.totalorder %v265, 0
        %v893 = vsel %vm892, 1, 0
        %vm894 = vcmp.eq.s32.totalorder %v893, 1
        %v895 = vsel %vm894, %v876, 0.0
        %v896 = vsel %vm894, %v877, 0.0
        %v897 = vsel %vm894, %v878, 0.0
        %v898 = vsel %vm894, %v879, 0.0
        %v899 = vsel %vm894, %v880, 0.0
        %v900 = vsel %vm894, %v881, 0.0
        %v901 = vsel %vm894, %v882, 0.0
        %v902 = vsel %vm894, %v883, 0.0
        %v903 = vsel %vm894, %v884, 0.0
        %v904 = vsel %vm894, %v885, 0.0
        %v905 = vsel %vm894, %v886, 0.0
        %v906 = vsel %vm894, %v887, 0.0
        %v907 = vsel %vm894, %v888, 0.0
        %v908 = vsel %vm894, %v889, 0.0
        %v909 = vsel %vm894, %v890, 0.0
        %v910 = vsel %vm894, %v891, 0.0
        %s911 = scalar_lea.vmem %s230, 256 [#allocation2]
        %v912 = vld [vmem:[%s911] sm:$0xff]
        %v913 = vld [vmem:[%s911 + $0x8] sm:$0xff]
        %v914 = vld [vmem:[%s911 + $0x10] sm:$0xff]
        %v915 = vld [vmem:[%s911 + $0x18] sm:$0xff]
        %v916 = vld [vmem:[%s911 + $0x20] sm:$0xff]
        %v917 = vld [vmem:[%s911 + $0x28] sm:$0xff]
        %v918 = vld [vmem:[%s911 + $0x30] sm:$0xff]
        %v919 = vld [vmem:[%s911 + $0x38] sm:$0xff]
        %v920 = vld [vmem:[%s911 + $0x40] sm:$0xff]
        %v921 = vld [vmem:[%s911 + $0x48] sm:$0xff]
        %v922 = vld [vmem:[%s911 + $0x50] sm:$0xff]
        %v923 = vld [vmem:[%s911 + $0x58] sm:$0xff]
        %v924 = vld [vmem:[%s911 + $0x60] sm:$0xff]
        %v925 = vld [vmem:[%s911 + $0x68] sm:$0xff]
        %v926 = vld [vmem:[%s911 + $0x70] sm:$0xff]
        %v927 = vld [vmem:[%s911 + $0x78] sm:$0xff]
        %v928 = vld [vmem:[%s911 + $0x80] sm:$0xff]
        %v929 = vld [vmem:[%s911 + $0x88] sm:$0xff]
        %v930 = vld [vmem:[%s911 + $0x90] sm:$0xff]
        %v931 = vld [vmem:[%s911 + $0x98] sm:$0xff]
        %v932 = vld [vmem:[%s911 + $0xa0] sm:$0xff]
        %v933 = vld [vmem:[%s911 + $0xa8] sm:$0xff]
        %v934 = vld [vmem:[%s911 + $0xb0] sm:$0xff]
        %v935 = vld [vmem:[%s911 + $0xb8] sm:$0xff]
        %v936 = vld [vmem:[%s911 + $0xc0] sm:$0xff]
        %v937 = vld [vmem:[%s911 + $0xc8] sm:$0xff]
        %v938 = vld [vmem:[%s911 + $0xd0] sm:$0xff]
        %v939 = vld [vmem:[%s911 + $0xd8] sm:$0xff]
        %v940 = vld [vmem:[%s911 + $0xe0] sm:$0xff]
        %v941 = vld [vmem:[%s911 + $0xe8] sm:$0xff]
        %v942 = vld [vmem:[%s911 + $0xf0] sm:$0xff]
        %v943 = vld [vmem:[%s911 + $0xf8] sm:$0xff]
        %944 = vmatpush.msra.mxu0 %v942
        %945 = vmatpush.msra.mxu0 %v940
        %946 = vmatpush.msra.mxu0 %v938
        %947 = vmatpush.msra.mxu0 %v936
        %948 = vmatpush.msra.mxu0 %v934
        %949 = vmatpush.msra.mxu0 %v932
        %950 = vmatpush.msra.mxu0 %v930
        %951 = vmatpush.msra.mxu0 %v928
        %952 = vmatpush.msra.mxu0 %v926
        %953 = vmatpush.msra.mxu0 %v924
        %954 = vmatpush.msra.mxu0 %v922
        %955 = vmatpush.msra.mxu0 %v920
        %956 = vmatpush.msra.mxu0 %v918
        %957 = vmatpush.msra.mxu0 %v916
        %958 = vmatpush.msra.mxu0 %v914
        %959 = vmatpush.msra.mxu0 %v912
        %960 = vmatmul.f32.gmra.mxu0 %v266
        %v961 = vpop.f32.mrf.mxu0
        %v962 = vadd.f32 %v333, %v961
        %963 = vmatmul.f32.gmra.mxu0 %v267
        %v964 = vpop.f32.mrf.mxu0
        %v965 = vadd.f32 %v338, %v964
        %966 = vmatmul.f32.gmra.mxu0 %v268
        %v967 = vpop.f32.mrf.mxu0
        %v968 = vadd.f32 %v343, %v967
        %969 = vmatmul.f32.gmra.mxu0 %v269
        %v970 = vpop.f32.mrf.mxu0
        %v971 = vadd.f32 %v348, %v970
        %972 = vmatmul.f32.gmra.mxu0 %v270
        %v973 = vpop.f32.mrf.mxu0
        %v974 = vadd.f32 %v353, %v973
        %975 = vmatmul.f32.gmra.mxu0 %v271
        %v976 = vpop.f32.mrf.mxu0
        %v977 = vadd.f32 %v358, %v976
        %978 = vmatmul.f32.gmra.mxu0 %v272
        %v979 = vpop.f32.mrf.mxu0
        %v980 = vadd.f32 %v363, %v979
        %981 = vmatmul.f32.gmra.mxu0 %v273
        %v982 = vpop.f32.mrf.mxu0
        %v983 = vadd.f32 %v368, %v982
        %984 = vmatmul.f32.gmra.mxu0 %v274
        %v985 = vpop.f32.mrf.mxu0
        %v986 = vadd.f32 %v373, %v985
        %987 = vmatmul.f32.gmra.mxu0 %v275
        %v988 = vpop.f32.mrf.mxu0
        %v989 = vadd.f32 %v378, %v988
        %990 = vmatmul.f32.gmra.mxu0 %v276
        %v991 = vpop.f32.mrf.mxu0
        %v992 = vadd.f32 %v383, %v991
        %993 = vmatmul.f32.gmra.mxu0 %v277
        %v994 = vpop.f32.mrf.mxu0
        %v995 = vadd.f32 %v388, %v994
        %996 = vmatmul.f32.gmra.mxu0 %v278
        %v997 = vpop.f32.mrf.mxu0
        %v998 = vadd.f32 %v393, %v997
        %999 = vmatmul.f32.gmra.mxu0 %v279
        %v1000 = vpop.f32.mrf.mxu0
        %v1001 = vadd.f32 %v398, %v1000
        %1002 = vmatmul.f32.gmra.mxu0 %v280
        %v1003 = vpop.f32.mrf.mxu0
        %v1004 = vadd.f32 %v403, %v1003
        %1005 = vmatmul.f32.gmra.mxu0 %v281
        %v1006 = vpop.f32.mrf.mxu0
        %v1007 = vadd.f32 %v408, %v1006
        %1008 = vdwg.mxu0
        %1009 = vmatpush.msra.mxu0 %v943
        %1010 = vmatpush.msra.mxu0 %v941
        %1011 = vmatpush.msra.mxu0 %v939
        %1012 = vmatpush.msra.mxu0 %v937
        %1013 = vmatpush.msra.mxu0 %v935
        %1014 = vmatpush.msra.mxu0 %v933
        %1015 = vmatpush.msra.mxu0 %v931
        %1016 = vmatpush.msra.mxu0 %v929
        %1017 = vmatpush.msra.mxu0 %v927
        %1018 = vmatpush.msra.mxu0 %v925
        %1019 = vmatpush.msra.mxu0 %v923
        %1020 = vmatpush.msra.mxu0 %v921
        %1021 = vmatpush.msra.mxu0 %v919
        %1022 = vmatpush.msra.mxu0 %v917
        %1023 = vmatpush.msra.mxu0 %v915
        %1024 = vmatpush.msra.mxu0 %v913
        %1025 = vmatmul.f32.gmra.mxu0 %v266
        %v1026 = vpop.f32.mrf.mxu0
        %v1027 = vadd.f32 %v333, %v1026
        %1028 = vmatmul.f32.gmra.mxu0 %v267
        %v1029 = vpop.f32.mrf.mxu0
        %v1030 = vadd.f32 %v338, %v1029
        %1031 = vmatmul.f32.gmra.mxu0 %v268
        %v1032 = vpop.f32.mrf.mxu0
        %v1033 = vadd.f32 %v343, %v1032
        %1034 = vmatmul.f32.gmra.mxu0 %v269
        %v1035 = vpop.f32.mrf.mxu0
        %v1036 = vadd.f32 %v348, %v1035
        %1037 = vmatmul.f32.gmra.mxu0 %v270
        %v1038 = vpop.f32.mrf.mxu0
        %v1039 = vadd.f32 %v353, %v1038
        %1040 = vmatmul.f32.gmra.mxu0 %v271
        %v1041 = vpop.f32.mrf.mxu0
        %v1042 = vadd.f32 %v358, %v1041
        %1043 = vmatmul.f32.gmra.mxu0 %v272
        %v1044 = vpop.f32.mrf.mxu0
        %v1045 = vadd.f32 %v363, %v1044
        %1046 = vmatmul.f32.gmra.mxu0 %v273
        %v1047 = vpop.f32.mrf.mxu0
        %v1048 = vadd.f32 %v368, %v1047
        %1049 = vmatmul.f32.gmra.mxu0 %v274
        %v1050 = vpop.f32.mrf.mxu0
        %v1051 = vadd.f32 %v373, %v1050
        %1052 = vmatmul.f32.gmra.mxu0 %v275
        %v1053 = vpop.f32.mrf.mxu0
        %v1054 = vadd.f32 %v378, %v1053
        %1055 = vmatmul.f32.gmra.mxu0 %v276
        %v1056 = vpop.f32.mrf.mxu0
        %v1057 = vadd.f32 %v383, %v1056
        %1058 = vmatmul.f32.gmra.mxu0 %v277
        %v1059 = vpop.f32.mrf.mxu0
        %v1060 = vadd.f32 %v388, %v1059
        %1061 = vmatmul.f32.gmra.mxu0 %v278
        %v1062 = vpop.f32.mrf.mxu0
        %v1063 = vadd.f32 %v393, %v1062
        %1064 = vmatmul.f32.gmra.mxu0 %v279
        %v1065 = vpop.f32.mrf.mxu0
        %v1066 = vadd.f32 %v398, %v1065
        %1067 = vmatmul.f32.gmra.mxu0 %v280
        %v1068 = vpop.f32.mrf.mxu0
        %v1069 = vadd.f32 %v403, %v1068
        %1070 = vmatmul.f32.gmra.mxu0 %v281
        %v1071 = vpop.f32.mrf.mxu0
        %v1072 = vadd.f32 %v408, %v1071
        %1073 = vdwg.mxu0
        %v1074 = vmul.f32 %v962, 0.5
        %v1075 = vmul.f32 %v1027, 0.5
        %v1076 = vmul.f32 %v965, 0.5
        %v1077 = vmul.f32 %v1030, 0.5
        %v1078 = vmul.f32 %v968, 0.5
        %v1079 = vmul.f32 %v1033, 0.5
        %v1080 = vmul.f32 %v971, 0.5
        %v1081 = vmul.f32 %v1036, 0.5
        %v1082 = vmul.f32 %v974, 0.5
        %v1083 = vmul.f32 %v1039, 0.5
        %v1084 = vmul.f32 %v977, 0.5
        %v1085 = vmul.f32 %v1042, 0.5
        %v1086 = vmul.f32 %v980, 0.5
        %v1087 = vmul.f32 %v1045, 0.5
        %v1088 = vmul.f32 %v983, 0.5
        %v1089 = vmul.f32 %v1048, 0.5
        %v1090 = vmul.f32 %v986, 0.5
        %v1091 = vmul.f32 %v1051, 0.5
        %v1092 = vmul.f32 %v989, 0.5
        %v1093 = vmul.f32 %v1054, 0.5
        %v1094 = vmul.f32 %v992, 0.5
        %v1095 = vmul.f32 %v1057, 0.5
        %v1096 = vmul.f32 %v995, 0.5
        %v1097 = vmul.f32 %v1060, 0.5
        %v1098 = vmul.f32 %v998, 0.5
        %v1099 = vmul.f32 %v1063, 0.5
        %v1100 = vmul.f32 %v1001, 0.5
        %v1101 = vmul.f32 %v1066, 0.5
        %v1102 = vmul.f32 %v1004, 0.5
        %v1103 = vmul.f32 %v1069, 0.5
        %v1104 = vmul.f32 %v1007, 0.5
        %v1105 = vmul.f32 %v1072, 0.5
        %v1106 = vmul.f32 %v962, 0.7978846
        %v1107 = vmul.f32 %v1027, 0.7978846
        %v1108 = vmul.f32 %v965, 0.7978846
        %v1109 = vmul.f32 %v1030, 0.7978846
        %v1110 = vmul.f32 %v968, 0.7978846
        %v1111 = vmul.f32 %v1033, 0.7978846
        %v1112 = vmul.f32 %v971, 0.7978846
        %v1113 = vmul.f32 %v1036, 0.7978846
        %v1114 = vmul.f32 %v974, 0.7978846
        %v1115 = vmul.f32 %v1039, 0.7978846
        %v1116 = vmul.f32 %v977, 0.7978846
        %v1117 = vmul.f32 %v1042, 0.7978846
        %v1118 = vmul.f32 %v980, 0.7978846
        %v1119 = vmul.f32 %v1045, 0.7978846
        %v1120 = vmul.f32 %v983, 0.7978846
        %v1121 = vmul.f32 %v1048, 0.7978846
        %v1122 = vmul.f32 %v986, 0.7978846
        %v1123 = vmul.f32 %v1051, 0.7978846
        %v1124 = vmul.f32 %v989, 0.7978846
        %v1125 = vmul.f32 %v1054, 0.7978846
        %v1126 = vmul.f32 %v992, 0.7978846
        %v1127 = vmul.f32 %v1057, 0.7978846
        %v1128 = vmul.f32 %v995, 0.7978846
        %v1129 = vmul.f32 %v1060, 0.7978846
        %v1130 = vmul.f32 %v998, 0.7978846
        %v1131 = vmul.f32 %v1063, 0.7978846
        %v1132 = vmul.f32 %v1001, 0.7978846
        %v1133 = vmul.f32 %v1066, 0.7978846
        %v1134 = vmul.f32 %v1004, 0.7978846
        %v1135 = vmul.f32 %v1069, 0.7978846
        %v1136 = vmul.f32 %v1007, 0.7978846
        %v1137 = vmul.f32 %v1072, 0.7978846
        %v1138 = vmul.f32 %v962, 0.044715
        %v1139 = vmul.f32 %v1027, 0.044715
        %v1140 = vmul.f32 %v965, 0.044715
        %v1141 = vmul.f32 %v1030, 0.044715
        %v1142 = vmul.f32 %v968, 0.044715
        %v1143 = vmul.f32 %v1033, 0.044715
        %v1144 = vmul.f32 %v971, 0.044715
        %v1145 = vmul.f32 %v1036, 0.044715
        %v1146 = vmul.f32 %v974, 0.044715
        %v1147 = vmul.f32 %v1039, 0.044715
        %v1148 = vmul.f32 %v977, 0.044715
        %v1149 = vmul.f32 %v1042, 0.044715
        %v1150 = vmul.f32 %v980, 0.044715
        %v1151 = vmul.f32 %v1045, 0.044715
        %v1152 = vmul.f32 %v983, 0.044715
        %v1153 = vmul.f32 %v1048, 0.044715
        %v1154 = vmul.f32 %v986, 0.044715
        %v1155 = vmul.f32 %v1051, 0.044715
        %v1156 = vmul.f32 %v989, 0.044715
        %v1157 = vmul.f32 %v1054, 0.044715
        %v1158 = vmul.f32 %v992, 0.044715
        %v1159 = vmul.f32 %v1057, 0.044715
        %v1160 = vmul.f32 %v995, 0.044715
        %v1161 = vmul.f32 %v1060, 0.044715
        %v1162 = vmul.f32 %v998, 0.044715
        %v1163 = vmul.f32 %v1063, 0.044715
        %v1164 = vmul.f32 %v1001, 0.044715
        %v1165 = vmul.f32 %v1066, 0.044715
        %v1166 = vmul.f32 %v1004, 0.044715
        %v1167 = vmul.f32 %v1069, 0.044715
        %v1168 = vmul.f32 %v1007, 0.044715
        %v1169 = vmul.f32 %v1072, 0.044715
        %v1170 = vmul.f32 %v1138, %v962
        %v1171 = vmul.f32 %v1139, %v1027
        %v1172 = vmul.f32 %v1140, %v965
        %v1173 = vmul.f32 %v1141, %v1030
        %v1174 = vmul.f32 %v1142, %v968
        %v1175 = vmul.f32 %v1143, %v1033
        %v1176 = vmul.f32 %v1144, %v971
        %v1177 = vmul.f32 %v1145, %v1036
        %v1178 = vmul.f32 %v1146, %v974
        %v1179 = vmul.f32 %v1147, %v1039
        %v1180 = vmul.f32 %v1148, %v977
        %v1181 = vmul.f32 %v1149, %v1042
        %v1182 = vmul.f32 %v1150, %v980
        %v1183 = vmul.f32 %v1151, %v1045
        %v1184 = vmul.f32 %v1152, %v983
        %v1185 = vmul.f32 %v1153, %v1048
        %v1186 = vmul.f32 %v1154, %v986
        %v1187 = vmul.f32 %v1155, %v1051
        %v1188 = vmul.f32 %v1156, %v989
        %v1189 = vmul.f32 %v1157, %v1054
        %v1190 = vmul.f32 %v1158, %v992
        %v1191 = vmul.f32 %v1159, %v1057
        %v1192 = vmul.f32 %v1160, %v995
        %v1193 = vmul.f32 %v1161, %v1060
        %v1194 = vmul.f32 %v1162, %v998
        %v1195 = vmul.f32 %v1163, %v1063
        %v1196 = vmul.f32 %v1164, %v1001
        %v1197 = vmul.f32 %v1165, %v1066
        %v1198 = vmul.f32 %v1166, %v1004
        %v1199 = vmul.f32 %v1167, %v1069
        %v1200 = vmul.f32 %v1168, %v1007
        %v1201 = vmul.f32 %v1169, %v1072
        %v1202 = vadd.f32 %v1170, 1.0
        %v1203 = vadd.f32 %v1171, 1.0
        %v1204 = vadd.f32 %v1172, 1.0
        %v1205 = vadd.f32 %v1173, 1.0
        %v1206 = vadd.f32 %v1174, 1.0
        %v1207 = vadd.f32 %v1175, 1.0
        %v1208 = vadd.f32 %v1176, 1.0
        %v1209 = vadd.f32 %v1177, 1.0
        %v1210 = vadd.f32 %v1178, 1.0
        %v1211 = vadd.f32 %v1179, 1.0
        %v1212 = vadd.f32 %v1180, 1.0
        %v1213 = vadd.f32 %v1181, 1.0
        %v1214 = vadd.f32 %v1182, 1.0
        %v1215 = vadd.f32 %v1183, 1.0
        %v1216 = vadd.f32 %v1184, 1.0
        %v1217 = vadd.f32 %v1185, 1.0
        %v1218 = vadd.f32 %v1186, 1.0
        %v1219 = vadd.f32 %v1187, 1.0
        %v1220 = vadd.f32 %v1188, 1.0
        %v1221 = vadd.f32 %v1189, 1.0
        %v1222 = vadd.f32 %v1190, 1.0
        %v1223 = vadd.f32 %v1191, 1.0
        %v1224 = vadd.f32 %v1192, 1.0
        %v1225 = vadd.f32 %v1193, 1.0
        %v1226 = vadd.f32 %v1194, 1.0
        %v1227 = vadd.f32 %v1195, 1.0
        %v1228 = vadd.f32 %v1196, 1.0
        %v1229 = vadd.f32 %v1197, 1.0
        %v1230 = vadd.f32 %v1198, 1.0
        %v1231 = vadd.f32 %v1199, 1.0
        %v1232 = vadd.f32 %v1200, 1.0
        %v1233 = vadd.f32 %v1201, 1.0
        %v1234 = vmul.f32 %v1106, %v1202
        %v1235 = vmul.f32 %v1107, %v1203
        %v1236 = vmul.f32 %v1108, %v1204
        %v1237 = vmul.f32 %v1109, %v1205
        %v1238 = vmul.f32 %v1110, %v1206
        %v1239 = vmul.f32 %v1111, %v1207
        %v1240 = vmul.f32 %v1112, %v1208
        %v1241 = vmul.f32 %v1113, %v1209
        %v1242 = vmul.f32 %v1114, %v1210
        %v1243 = vmul.f32 %v1115, %v1211
        %v1244 = vmul.f32 %v1116, %v1212
        %v1245 = vmul.f32 %v1117, %v1213
        %v1246 = vmul.f32 %v1118, %v1214
        %v1247 = vmul.f32 %v1119, %v1215
        %v1248 = vmul.f32 %v1120, %v1216
        %v1249 = vmul.f32 %v1121, %v1217
        %v1250 = vmul.f32 %v1122, %v1218
        %v1251 = vmul.f32 %v1123, %v1219
        %v1252 = vmul.f32 %v1124, %v1220
        %v1253 = vmul.f32 %v1125, %v1221
        %v1254 = vmul.f32 %v1126, %v1222
        %v1255 = vmul.f32 %v1127, %v1223
        %v1256 = vmul.f32 %v1128, %v1224
        %v1257 = vmul.f32 %v1129, %v1225
        %v1258 = vmul.f32 %v1130, %v1226
        %v1259 = vmul.f32 %v1131, %v1227
        %v1260 = vmul.f32 %v1132, %v1228
        %v1261 = vmul.f32 %v1133, %v1229
        %v1262 = vmul.f32 %v1134, %v1230
        %v1263 = vmul.f32 %v1135, %v1231
        %v1264 = vmul.f32 %v1136, %v1232
        %v1265 = vmul.f32 %v1137, %v1233
        %v1266 = vtanh.pop %v1234
        %v1267 = vtanh.pop %v1235
        %v1268 = vtanh.pop %v1236
        %v1269 = vtanh.pop %v1237
        %v1270 = vtanh.pop %v1238
        %v1271 = vtanh.pop %v1239
        %v1272 = vtanh.pop %v1240
        %v1273 = vtanh.pop %v1241
        %v1274 = vtanh.pop %v1242
        %v1275 = vtanh.pop %v1243
        %v1276 = vtanh.pop %v1244
        %v1277 = vtanh.pop %v1245
        %v1278 = vtanh.pop %v1246
        %v1279 = vtanh.pop %v1247
        %v1280 = vtanh.pop %v1248
        %v1281 = vtanh.pop %v1249
        %v1282 = vtanh.pop %v1250
        %v1283 = vtanh.pop %v1251
        %v1284 = vtanh.pop %v1252
        %v1285 = vtanh.pop %v1253
        %v1286 = vtanh.pop %v1254
        %v1287 = vtanh.pop %v1255
        %v1288 = vtanh.pop %v1256
        %v1289 = vtanh.pop %v1257
        %v1290 = vtanh.pop %v1258
        %v1291 = vtanh.pop %v1259
        %v1292 = vtanh.pop %v1260
        %v1293 = vtanh.pop %v1261
        %v1294 = vtanh.pop %v1262
        %v1295 = vtanh.pop %v1263
        %v1296 = vtanh.pop %v1264
        %v1297 = vtanh.pop %v1265
        %v1298 = vadd.f32 %v1266, 1.0
        %v1299 = vadd.f32 %v1267, 1.0
        %v1300 = vadd.f32 %v1268, 1.0
        %v1301 = vadd.f32 %v1269, 1.0
        %v1302 = vadd.f32 %v1270, 1.0
        %v1303 = vadd.f32 %v1271, 1.0
        %v1304 = vadd.f32 %v1272, 1.0
        %v1305 = vadd.f32 %v1273, 1.0
        %v1306 = vadd.f32 %v1274, 1.0
        %v1307 = vadd.f32 %v1275, 1.0
        %v1308 = vadd.f32 %v1276, 1.0
        %v1309 = vadd.f32 %v1277, 1.0
        %v1310 = vadd.f32 %v1278, 1.0
        %v1311 = vadd.f32 %v1279, 1.0
        %v1312 = vadd.f32 %v1280, 1.0
        %v1313 = vadd.f32 %v1281, 1.0
        %v1314 = vadd.f32 %v1282, 1.0
        %v1315 = vadd.f32 %v1283, 1.0
        %v1316 = vadd.f32 %v1284, 1.0
        %v1317 = vadd.f32 %v1285, 1.0
        %v1318 = vadd.f32 %v1286, 1.0
        %v1319 = vadd.f32 %v1287, 1.0
        %v1320 = vadd.f32 %v1288, 1.0
        %v1321 = vadd.f32 %v1289, 1.0
        %v1322 = vadd.f32 %v1290, 1.0
        %v1323 = vadd.f32 %v1291, 1.0
        %v1324 = vadd.f32 %v1292, 1.0
        %v1325 = vadd.f32 %v1293, 1.0
        %v1326 = vadd.f32 %v1294, 1.0
        %v1327 = vadd.f32 %v1295, 1.0
        %v1328 = vadd.f32 %v1296, 1.0
        %v1329 = vadd.f32 %v1297, 1.0
        %v1330 = vmul.f32 %v1074, %v1298
        %v1331 = vmul.f32 %v1075, %v1299
        %v1332 = vmul.f32 %v1076, %v1300
        %v1333 = vmul.f32 %v1077, %v1301
        %v1334 = vmul.f32 %v1078, %v1302
        %v1335 = vmul.f32 %v1079, %v1303
        %v1336 = vmul.f32 %v1080, %v1304
        %v1337 = vmul.f32 %v1081, %v1305
        %v1338 = vmul.f32 %v1082, %v1306
        %v1339 = vmul.f32 %v1083, %v1307
        %v1340 = vmul.f32 %v1084, %v1308
        %v1341 = vmul.f32 %v1085, %v1309
        %v1342 = vmul.f32 %v1086, %v1310
        %v1343 = vmul.f32 %v1087, %v1311
        %v1344 = vmul.f32 %v1088, %v1312
        %v1345 = vmul.f32 %v1089, %v1313
        %v1346 = vmul.f32 %v1090, %v1314
        %v1347 = vmul.f32 %v1091, %v1315
        %v1348 = vmul.f32 %v1092, %v1316
        %v1349 = vmul.f32 %v1093, %v1317
        %v1350 = vmul.f32 %v1094, %v1318
        %v1351 = vmul.f32 %v1095, %v1319
        %v1352 = vmul.f32 %v1096, %v1320
        %v1353 = vmul.f32 %v1097, %v1321
        %v1354 = vmul.f32 %v1098, %v1322
        %v1355 = vmul.f32 %v1099, %v1323
        %v1356 = vmul.f32 %v1100, %v1324
        %v1357 = vmul.f32 %v1101, %v1325
        %v1358 = vmul.f32 %v1102, %v1326
        %v1359 = vmul.f32 %v1103, %v1327
        %v1360 = vmul.f32 %v1104, %v1328
        %v1361 = vmul.f32 %v1105, %v1329
        %v1362 = vadd.f32 %v1330, %v1331
        %1363 = vadd.xlane.f32.xlu0 %v1362
        %v1364 = vpop.xlane.xlu0 %1363
        %v1365 = vadd.f32 %v1332, %v1333
        %1366 = vadd.xlane.f32.xlu0 %v1365
        %v1367 = vpop.xlane.xlu0 %1366
        %v1368 = vadd.f32 %v1334, %v1335
        %1369 = vadd.xlane.f32.xlu0 %v1368
        %v1370 = vpop.xlane.xlu0 %1369
        %v1371 = vadd.f32 %v1336, %v1337
        %1372 = vadd.xlane.f32.xlu0 %v1371
        %v1373 = vpop.xlane.xlu0 %1372
        %v1374 = vadd.f32 %v1338, %v1339
        %1375 = vadd.xlane.f32.xlu0 %v1374
        %v1376 = vpop.xlane.xlu0 %1375
        %v1377 = vadd.f32 %v1340, %v1341
        %1378 = vadd.xlane.f32.xlu0 %v1377
        %v1379 = vpop.xlane.xlu0 %1378
        %v1380 = vadd.f32 %v1342, %v1343
        %1381 = vadd.xlane.f32.xlu0 %v1380
        %v1382 = vpop.xlane.xlu0 %1381
        %v1383 = vadd.f32 %v1344, %v1345
        %1384 = vadd.xlane.f32.xlu0 %v1383
        %v1385 = vpop.xlane.xlu0 %1384
        %v1386 = vadd.f32 %v1346, %v1347
        %1387 = vadd.xlane.f32.xlu0 %v1386
        %v1388 = vpop.xlane.xlu0 %1387
        %v1389 = vadd.f32 %v1348, %v1349
        %1390 = vadd.xlane.f32.xlu0 %v1389
        %v1391 = vpop.xlane.xlu0 %1390
        %v1392 = vadd.f32 %v1350, %v1351
        %1393 = vadd.xlane.f32.xlu0 %v1392
        %v1394 = vpop.xlane.xlu0 %1393
        %v1395 = vadd.f32 %v1352, %v1353
        %1396 = vadd.xlane.f32.xlu0 %v1395
        %v1397 = vpop.xlane.xlu0 %1396
        %v1398 = vadd.f32 %v1354, %v1355
        %1399 = vadd.xlane.f32.xlu0 %v1398
        %v1400 = vpop.xlane.xlu0 %1399
        %v1401 = vadd.f32 %v1356, %v1357
        %1402 = vadd.xlane.f32.xlu0 %v1401
        %v1403 = vpop.xlane.xlu0 %1402
        %v1404 = vadd.f32 %v1358, %v1359
        %1405 = vadd.xlane.f32.xlu0 %v1404
        %v1406 = vpop.xlane.xlu0 %1405
        %v1407 = vadd.f32 %v1360, %v1361
        %1408 = vadd.xlane.f32.xlu0 %v1407
        %v1409 = vpop.xlane.xlu0 %1408
        %v1410 = vmul.f32 %v1364, 0.00390625
        %v1411 = vmul.f32 %v1367, 0.00390625
        %v1412 = vmul.f32 %v1370, 0.00390625
        %v1413 = vmul.f32 %v1373, 0.00390625
        %v1414 = vmul.f32 %v1376, 0.00390625
        %v1415 = vmul.f32 %v1379, 0.00390625
        %v1416 = vmul.f32 %v1382, 0.00390625
        %v1417 = vmul.f32 %v1385, 0.00390625
        %v1418 = vmul.f32 %v1388, 0.00390625
        %v1419 = vmul.f32 %v1391, 0.00390625
        %v1420 = vmul.f32 %v1394, 0.00390625
        %v1421 = vmul.f32 %v1397, 0.00390625
        %v1422 = vmul.f32 %v1400, 0.00390625
        %v1423 = vmul.f32 %v1403, 0.00390625
        %v1424 = vmul.f32 %v1406, 0.00390625
        %v1425 = vmul.f32 %v1409, 0.00390625
        %vm1426 = vcmp.eq.s32.totalorder %v265, 1
        %v1427 = vsel %vm1426, 1, 0
        %vm1428 = vcmp.eq.s32.totalorder %v1427, 1
        %v1429 = vsel %vm1428, %v1410, %v895
        %v1430 = vsel %vm1428, %v1411, %v896
        %v1431 = vsel %vm1428, %v1412, %v897
        %v1432 = vsel %vm1428, %v1413, %v898
        %v1433 = vsel %vm1428, %v1414, %v899
        %v1434 = vsel %vm1428, %v1415, %v900
        %v1435 = vsel %vm1428, %v1416, %v901
        %v1436 = vsel %vm1428, %v1417, %v902
        %v1437 = vsel %vm1428, %v1418, %v903
        %v1438 = vsel %vm1428, %v1419, %v904
        %v1439 = vsel %vm1428, %v1420, %v905
        %v1440 = vsel %vm1428, %v1421, %v906
        %v1441 = vsel %vm1428, %v1422, %v907
        %v1442 = vsel %vm1428, %v1423, %v908
        %v1443 = vsel %vm1428, %v1424, %v909
        %v1444 = vsel %vm1428, %v1425, %v910
        %v1445 = vld [vmem:[#allocation5] sm:$0xff]
        %v1446 = vld [vmem:[#allocation5 + $0x8] sm:$0xff]
        %v1447 = vld [vmem:[#allocation5 + $0x10] sm:$0xff]
        %v1448 = vld [vmem:[#allocation5 + $0x18] sm:$0xff]
        %v1449 = vld [vmem:[#allocation5 + $0x20] sm:$0xff]
        %v1450 = vld [vmem:[#allocation5 + $0x28] sm:$0xff]
        %v1451 = vld [vmem:[#allocation5 + $0x30] sm:$0xff]
        %v1452 = vld [vmem:[#allocation5 + $0x38] sm:$0xff]
        %v1453 = vld [vmem:[#allocation5 + $0x40] sm:$0xff]
        %v1454 = vld [vmem:[#allocation5 + $0x48] sm:$0xff]
        %v1455 = vld [vmem:[#allocation5 + $0x50] sm:$0xff]
        %v1456 = vld [vmem:[#allocation5 + $0x58] sm:$0xff]
        %v1457 = vld [vmem:[#allocation5 + $0x60] sm:$0xff]
        %v1458 = vld [vmem:[#allocation5 + $0x68] sm:$0xff]
        %v1459 = vld [vmem:[#allocation5 + $0x70] sm:$0xff]
        %v1460 = vld [vmem:[#allocation5 + $0x78] sm:$0xff]
        %1461 = vxpose.xlu0.b32.start [1/16] %v1429, 128
        %1462 = vxpose.xlu0.b32.cont [2/16] %v1430, 128
        %1463 = vxpose.xlu0.b32.cont [3/16] %v1431, 128
        %1464 = vxpose.xlu0.b32.cont [4/16] %v1432, 128
        %1465 = vxpose.xlu0.b32.cont [5/16] %v1433, 128
        %1466 = vxpose.xlu0.b32.cont [6/16] %v1434, 128
        %1467 = vxpose.xlu0.b32.cont [7/16] %v1435, 128
        %1468 = vxpose.xlu0.b32.cont [8/16] %v1436, 128
        %1469 = vxpose.xlu0.b32.cont [9/16] %v1437, 128
        %1470 = vxpose.xlu0.b32.cont [10/16] %v1438, 128
        %1471 = vxpose.xlu0.b32.cont [11/16] %v1439, 128
        %1472 = vxpose.xlu0.b32.cont [12/16] %v1440, 128
        %1473 = vxpose.xlu0.b32.cont [13/16] %v1441, 128
        %1474 = vxpose.xlu0.b32.cont [14/16] %v1442, 128
        %1475 = vxpose.xlu0.b32.cont [15/16] %v1443, 128
        %1476 = vxpose.xlu0.b32.end [16/16] %v1444, 128
        %v1477 = vpop.trf.xlu0
        %v1478 = vpop.trf.xlu0
        %v1479 = vpop.trf.xlu0
        %v1480 = vpop.trf.xlu0
        %v1481 = vpop.trf.xlu0
        %v1482 = vpop.trf.xlu0
        %v1483 = vpop.trf.xlu0
        %v1484 = vpop.trf.xlu0
        %v1485 = vpop.trf.xlu0
        %v1486 = vpop.trf.xlu0
        %v1487 = vpop.trf.xlu0
        %v1488 = vpop.trf.xlu0
        %v1489 = vpop.trf.xlu0
        %v1490 = vpop.trf.xlu0
        %v1491 = vpop.trf.xlu0
        %v1492 = vpop.trf.xlu0
        %1493 = vmatpush.msra.mxu0 %v1460
        %1494 = vmatpush.msra.mxu0 %v1459
        %1495 = vmatpush.msra.mxu0 %v1458
        %1496 = vmatpush.msra.mxu0 %v1457
        %1497 = vmatpush.msra.mxu0 %v1456
        %1498 = vmatpush.msra.mxu0 %v1455
        %1499 = vmatpush.msra.mxu0 %v1454
        %1500 = vmatpush.msra.mxu0 %v1453
        %1501 = vmatpush.msra.mxu0 %v1452
        %1502 = vmatpush.msra.mxu0 %v1451
        %1503 = vmatpush.msra.mxu0 %v1450
        %1504 = vmatpush.msra.mxu0 %v1449
        %1505 = vmatpush.msra.mxu0 %v1448
        %1506 = vmatpush.msra.mxu0 %v1447
        %1507 = vmatpush.msra.mxu0 %v1446
        %1508 = vmatpush.msra.mxu0 %v1445
        %1509 = vmatmul.f32.gmra.mxu0 %v1477
        %v1510 = vpop.f32.mrf.mxu0
        %v1511 = vadd.f32 0.0, %v1510
        %1512 = vmatmul.f32.gmra.mxu0 %v1478
        %v1513 = vpop.f32.mrf.mxu0
        %1514 = vmatmul.f32.gmra.mxu0 %v1479
        %v1515 = vpop.f32.mrf.mxu0
        %1516 = vmatmul.f32.gmra.mxu0 %v1480
        %v1517 = vpop.f32.mrf.mxu0
        %1518 = vmatmul.f32.gmra.mxu0 %v1481
        %v1519 = vpop.f32.mrf.mxu0
        %1520 = vmatmul.f32.gmra.mxu0 %v1482
        %v1521 = vpop.f32.mrf.mxu0
        %1522 = vmatmul.f32.gmra.mxu0 %v1483
        %v1523 = vpop.f32.mrf.mxu0
        %1524 = vmatmul.f32.gmra.mxu0 %v1484
        %v1525 = vpop.f32.mrf.mxu0
        %1526 = vmatmul.f32.gmra.mxu0 %v1485
        %v1527 = vpop.f32.mrf.mxu0
        %1528 = vmatmul.f32.gmra.mxu0 %v1486
        %v1529 = vpop.f32.mrf.mxu0
        %1530 = vmatmul.f32.gmra.mxu0 %v1487
        %v1531 = vpop.f32.mrf.mxu0
        %1532 = vmatmul.f32.gmra.mxu0 %v1488
        %v1533 = vpop.f32.mrf.mxu0
        %1534 = vmatmul.f32.gmra.mxu0 %v1489
        %v1535 = vpop.f32.mrf.mxu0
        %1536 = vmatmul.f32.gmra.mxu0 %v1490
        %v1537 = vpop.f32.mrf.mxu0
        %1538 = vmatmul.f32.gmra.mxu0 %v1491
        %v1539 = vpop.f32.mrf.mxu0
        %1540 = vmatmul.f32.gmra.mxu0 %v1492
        %v1541 = vpop.f32.mrf.mxu0
        %1542 = vdwg.mxu0
        %v1543 = vld [vmem:[%s4] sm:$0x1]
        %v1545 = vperm.slane %v1543, 0
        %v1547 = vadd.f32 %v1511, %v1545
        %v1548 = vmul.f32 %v1547, 0.5
        %v1549 = vmul.f32 %v1547, 0.7978846
        %v1550 = vmul.f32 %v1547, 0.044715
        %v1551 = vmul.f32 %v1550, %v1547
        %v1552 = vadd.f32 %v1551, 1.0
        %v1553 = vmul.f32 %v1549, %v1552
        %v1554 = vtanh.pop %v1553
        %v1555 = vadd.f32 %v1554, 1.0
        %v1556 = vmul.f32 %v1548, %v1555
        %1557 = vst [vmem:[%s262] sm:$0x3] %v1556
        %s1558 = sand.u32 %s141, 1
        %s1559 = scalar_lea.sflag [#allocation4], %s1558
        %s1560 = sand.u32 %s141, 1
        %s1561 = smul.addr %s1560, 2
        %s1562 = scalar_lea.vmem [#allocation7], %s1561
        // Predicated region
        $region49: #{tpu_custom_call.1} parent=39 // pred_check
          %p1563 = pneg %p151
        $region50: #{tpu_custom_call.1} parent=39 // pred_check_branch
          %1565 = sbr.rel (%p1563) target = $region52
        $region51: #{tpu_custom_call.1} parent=39 // pred_region
          %1567 = vsyncadd %s1559, 0
          %s1568 = smul.addr %s23, 2
          %s1569 = scalar_lea.hbm %s5, %s1568
          %s1571 = sshll.u32 %s1562, 4
          %s1572 = int_to_ptr.vmem [resolvable:$true] %s1571
          %s1573 = sshll.u32 %s1569, 4
          %s1574 = int_to_ptr.hbm [resolvable:$true] %s1573
          %1576 = dma.vmem_to_hbm [thread:$0]  %s1572, 32, %s1574, %s1559
        $region52: #{tpu_custom_call.1} parent=39 // pred_fallthru
          _
      $region40: #{tpu_custom_call.1} parent=5 // pred_fallthru
        _
      %p1577 = scmp.le.s32.totalorder 2, %s18
      // Predicated region
      $region53: #{tpu_custom_call.1} parent=5 // pred_check
        %p1578 = pneg %p1577
      $region54: #{tpu_custom_call.1} parent=5 // pred_check_branch
        %1580 = sbr.rel (%p1578) target = $region56
      $region55: #{tpu_custom_call.1} parent=5 // pred_region
        %s1581 = ssub.s32 %s18, 2
        // Predicated region
        $region57: #{tpu_custom_call.1} parent=55 // pred_check
          %p1582 = pneg %p157
        $region58: #{tpu_custom_call.1} parent=55 // pred_check_branch
          %1584 = sbr.rel (%p1582) target = $region60
        $region59: #{tpu_custom_call.1} parent=55 // pred_region
          %s1585 = sand.u32 %s142, 1
          %s1586 = scalar_lea.sflag [#allocation4], %s1585
          %s1587 = sand.u32 %s142, 1
          %s1588 = smul.addr %s1587, 2
          %s1589 = scalar_lea.vmem [#allocation7], %s1588
          %1591 = dma.done %s1586, 32
        $region60: #{tpu_custom_call.1} parent=55 // pred_fallthru
          _
      $region56: #{tpu_custom_call.1} parent=5 // pred_fallthru
        _
    $region6: #{tpu_custom_call.1} parent=1 // loop_footer
      %s22 = sadd.s32 1, %s18
    $region7: #{tpu_custom_call.1} parent=1 // loop_footer_branch
      %17 = sbr.rel target = $region3
    $region8: #{tpu_custom_call.1} parent=1 // loop_exit
      _
    %1592 = vsyncpa [#allocation3], 1
    %s1593 = scalar_lea.sflag [#allocation3], 1
    %1594 = vsyncpa %s1593, 1
    %1595 = vsyncpa [#allocation6], 1
    %1596 = vsyncpa [#allocation4], 1
    %s1597 = scalar_lea.sflag [#allocation4], 1
    %1598 = vsyncpa %s1597, 1

</llo_original>
